<compile_context>
chip_gen: v7x
topology: tpu7x:2x2x1
jax: 0.10.0
libtpu: 0.0.40
codegen_flags: <defaults>
</compile_context>

<pallas_src>
import functools

import jax
import jax.numpy as jnp
from jax.experimental import pallas as pl
from jax.experimental.pallas import tpu as pltpu


# ----------------------------------------------------------------------------
# Kernel: full GRU recurrence in one invocation; o_ref <- h_T[:, :H].
# ----------------------------------------------------------------------------
def gru_last_kernel(ids_ref, table_ref, whh_ref, bhn_ref, o_ref, *, B, T, H):
    """GRU over the whole (short, fixed) sequence.

    ids_ref  : SMEM [B, T] int32 token ids (scalar prefetch).
    table_ref: VMEM [V, 3*Hp] f32, per-token input projection
               (emb @ W_ih + b_ih + [b_hr | b_hz | 0]); gates r|z|n, each Hp wide.
    whh_ref  : VMEM [Hp, 3*Hp] f32, hidden-to-hidden weights (zero padded).
    bhn_ref  : VMEM [1, Hp] f32, n-gate hidden bias (must stay inside r*(...)).
    o_ref    : VMEM [B, H] f32, final hidden state.
    """
    Hp = whh_ref.shape[0]
    G2 = 2 * Hp

    # Hoisted broadcast (JAX does not CSE broadcast_in_dim inside loops).
    bhn = jnp.broadcast_to(bhn_ref[...], (B, Hp))

    def gather(t):
        # Fused embedding lookup + input projection: one precomputed table row
        # per token (b_ir, b_iz, b_in, b_hr, b_hz already folded in).
        return jnp.concatenate(
            [table_ref[pl.ds(ids_ref[b, t], 1), :] for b in range(B)], axis=0
        )  # [B, 3*Hp]

    def update(gi, gh, h):
        # Lane-aligned gate slices; r and z sigmoids fused on one 2*Hp slab.
        rz = jax.nn.sigmoid(gi[:, :G2] + gh[:, :G2])
        r = rz[:, :Hp]
        z = rz[:, Hp:]
        n = jnp.tanh(gi[:, G2:] + r * (gh[:, G2:] + bhn))   # b_hn inside r*(...)
        return n + z * (h - n)                              # == (1-z)*n + z*h

    # t = 0: h0 == 0  =>  h @ W_hh == 0; skip the matmul on the serial chain.
    h = update(
        gather(0),
        jnp.zeros((B, 3 * Hp), jnp.float32),
        jnp.zeros((B, Hp), jnp.float32),
    )

    # Remaining steps: static unroll (T is small & fixed).  The serial
    # h-dependence bounds live ranges; W_hh is re-read from VMEM next to each
    # matmul push instead of being held live as a 48-vreg register value.
    for t in range(1, T):
        gh = jnp.dot(h, whh_ref[...], preferred_element_type=jnp.float32)
        h = update(gather(t), gh, h)

    o_ref[...] = h[:, :H].astype(o_ref.dtype)


# ----------------------------------------------------------------------------
# One-time parameter preparation (off the per-call hot path).
# Weights are in [in, 3H] layout (transposed from PyTorch's [3H, in]),
# gate order r, z, n preserved.
# ----------------------------------------------------------------------------
def prepare_gru_params(emb_table, w_ih, w_hh, b_ih, b_hh):
    E, threeH = w_ih.shape
    H = threeH // 3
    Hp = ((H + 127) // 128) * 128  # pad each gate to a full 128-lane slab

    def pad_gates(w):  # [rows, 3H] -> [rows, 3Hp], each gate 128-lane aligned
        parts = [jnp.pad(w[:, g * H:(g + 1) * H], ((0, 0), (0, Hp - H)))
                 for g in range(3)]
        return jnp.concatenate(parts, axis=1)

    w_ih_p = pad_gates(w_ih)                                   # [E, 3Hp]
    b_ih_p = pad_gates(b_ih)                                   # [1, 3Hp]
    b_hh_p = pad_gates(b_hh)                                   # [1, 3Hp]

    # Fold every bias that the GRU math allows into the per-token table:
    #   r/z gates: sigmoid(x W_i* + b_i* + h W_h* + b_h*)  -> fold b_i*, b_h*
    #   n gate   : tanh(x W_in + b_in + r*(h W_hn + b_hn)) -> fold b_in only.
    b_fold = b_ih_p + jnp.concatenate(
        [b_hh_p[:, :2 * Hp], jnp.zeros((1, Hp), b_hh_p.dtype)], axis=1)

    table = (jnp.dot(emb_table, w_ih_p, preferred_element_type=jnp.float32)
             + b_fold)                                          # [V, 3Hp]
    w_hh_p = jnp.pad(pad_gates(w_hh), ((0, Hp - H), (0, 0)))    # [Hp, 3Hp]
    b_hn_p = b_hh_p[:, 2 * Hp:]                                 # [1, Hp]
    return table, w_hh_p, b_hn_p, H, Hp


# ----------------------------------------------------------------------------
# Per-call forward: a single pallas_call, no surrounding HLOs.
# ----------------------------------------------------------------------------
def question_type_forward(q_ids, table, w_hh_p, b_hn_p, H):
    B, T = q_ids.shape
    V, G = table.shape
    Hp = G // 3

    grid_spec = pltpu.PrefetchScalarGridSpec(
        num_scalar_prefetch=1,                       # q_ids -> SMEM
        grid=(1,),                                   # recurrence runs in-kernel
        in_specs=[
            pl.BlockSpec((V, G), lambda i, ids: (0, 0)),    # GI table
            pl.BlockSpec((Hp, G), lambda i, ids: (0, 0)),   # W_hh
            pl.BlockSpec((1, Hp), lambda i, ids: (0, 0)),   # b_hn
        ],
        out_specs=pl.BlockSpec((B, H), lambda i, ids: (0, 0)),
    )

    kernel = functools.partial(gru_last_kernel, B=B, T=T, H=H)
    return pl.pallas_call(
        kernel,
        grid_spec=grid_spec,
        out_shape=jax.ShapeDtypeStruct((B, H), jnp.float32),
        compiler_params=pltpu.CompilerParams(
            dimension_semantics=("arbitrary",)),     # recurrence is sequential
    )(q_ids, table, w_hh_p, b_hn_p)


# ----------------------------------------------------------------------------
# Pure-JAX reference (PyTorch GRU semantics) for a correctness check.
# ----------------------------------------------------------------------------
def gru_reference(q_ids, emb_table, w_ih, w_hh, b_ih, b_hh):
    H = w_hh.shape[0]
    x = emb_table[q_ids]                              # [B, T, E]
    B, T, _ = x.shape
    h = jnp.zeros((B, H), jnp.float32)
    for t in range(T):
        gi = x[:, t] @ w_ih + b_ih
        gh = h @ w_hh + b_hh
        i_r, i_z, i_n = jnp.split(gi, 3, axis=1)
        h_r, h_z, h_n = jnp.split(gh, 3, axis=1)
        r = jax.nn.sigmoid(i_r + h_r)
        z = jax.nn.sigmoid(i_z + h_z)
        n = jnp.tanh(i_n + r * h_n)
        h = (1.0 - z) * n + z * h
    return h


if __name__ == "__main__":
    # Small shapes implied by the module: q is [B, T] token ids;
    # w_emb: vocab V -> embedding dim E; q_emb: single-layer GRU, hidden H.
    B, T, E, H, V = 2, 8, 32, 32, 50

    key = jax.random.PRNGKey(0)
    k_emb, k_wi, k_wh, k_bi, k_bh, k_q = jax.random.split(key, 6)

    emb_table = jax.random.normal(k_emb, (V, E), dtype=jnp.float32) * 0.1
    # GRU params stored as [in, 3H] (gate order r, z, n as in PyTorch).
    w_ih = jax.random.normal(k_wi, (E, 3 * H), dtype=jnp.float32) * 0.1
    w_hh = jax.random.normal(k_wh, (H, 3 * H), dtype=jnp.float32) * 0.1
    b_ih = jax.random.normal(k_bi, (1, 3 * H), dtype=jnp.float32) * 0.1
    b_hh = jax.random.normal(k_bh, (1, 3 * H), dtype=jnp.float32) * 0.1

    q = jax.random.randint(k_q, (B, T), 0, V, dtype=jnp.int32)

    # One-time parameter prep (fold embedding + input projection + r/z biases).
    table, w_hh_p, b_hn_p, H_, Hp = prepare_gru_params(
        emb_table, w_ih, w_hh, b_ih, b_hh)

    out = question_type_forward(q, table, w_hh_p, b_hn_p, H_)
    jax.block_until_ready(out)
    assert out.shape == (B, H)

    # Numerical check against the pure-JAX PyTorch-semantics reference.
    ref = gru_reference(q, emb_table, w_ih, w_hh, b_ih, b_hh)
    max_err = float(jnp.max(jnp.abs(out - ref)))
    assert max_err < 1e-4, f"mismatch vs reference: {max_err}"

    # TODO(synk): `classify` (self.classifier) is unused in forward(); not implemented.
    print("KERNEL_OK")
</pallas_src>

<mosaic_0001>
module attributes {stable_mosaic.version = 11 : i64} {
  func.func @gru_last_kernel(%arg0: i32, %arg1: memref<2x8xi32, #tpu.memory_space<smem>>, %arg2: memref<50x384xf32, #tpu.memory_space<vmem>>, %arg3: memref<128x384xf32, #tpu.memory_space<vmem>>, %arg4: memref<1x128xf32, #tpu.memory_space<vmem>>, %arg5: memref<2x32xf32, #tpu.memory_space<vmem>>) attributes {dimension_semantics = [#tpu.dimension_semantics<arbitrary>], iteration_bounds = array<i64: 1>, scalar_prefetch = 1 : i64, scratch_operands = 0 : i64, tpu.core_type = #tpu.core_type<tc>, window_params = [{pipeline_mode = #tpu.pipeline_mode<synchronous>, transform_indices = @transform_0, window_bounds = array<i64: 50, 384>}, {pipeline_mode = #tpu.pipeline_mode<synchronous>, transform_indices = @transform_1, window_bounds = array<i64: 128, 384>}, {pipeline_mode = #tpu.pipeline_mode<synchronous>, transform_indices = @transform_2, window_bounds = array<i64: 1, 128>}, {pipeline_mode = #tpu.pipeline_mode<synchronous>, transform_indices = @transform_3, window_bounds = array<i64: 2, 32>}]} {
    %c0 = arith.constant 0 : index
    %c0_0 = arith.constant 0 : index
    %0 = vector.load %arg4[%c0, %c0_0] : memref<1x128xf32, #tpu.memory_space<vmem>>, vector<1x128xf32>
    %1 = vector.shape_cast %0 : vector<1x128xf32> to vector<1x128xf32>
    %2 = vector.broadcast %1 : vector<1x128xf32> to vector<2x128xf32>
    %c0_1 = arith.constant 0 : index
    %c0_2 = arith.constant 0 : index
    %3 = memref.load %arg1[%c0_1, %c0_2] : memref<2x8xi32, #tpu.memory_space<smem>>
    %4 = arith.index_cast %3 : i32 to index
    %c0_3 = arith.constant 0 : index
    %5 = vector.load %arg2[%4, %c0_3] : memref<50x384xf32, #tpu.memory_space<vmem>>, vector<1x384xf32>
    %c1 = arith.constant 1 : index
    %c0_4 = arith.constant 0 : index
    %6 = memref.load %arg1[%c1, %c0_4] : memref<2x8xi32, #tpu.memory_space<smem>>
    %7 = arith.index_cast %6 : i32 to index
    %c0_5 = arith.constant 0 : index
    %8 = vector.load %arg2[%7, %c0_5] : memref<50x384xf32, #tpu.memory_space<vmem>>, vector<1x384xf32>
    %9 = tpu.concatenate %5, %8 in 0 : vector<1x384xf32>, vector<1x384xf32> -> vector<2x384xf32>
    %cst = arith.constant 0.000000e+00 : f32
    %10 = vector.broadcast %cst : f32 to vector<2x384xf32>
    %cst_6 = arith.constant 0.000000e+00 : f32
    %11 = vector.broadcast %cst_6 : f32 to vector<2x128xf32>
    %12 = vector.extract_strided_slice %9 {offsets = [0, 0], sizes = [2, 256], strides = [1, 1]} : vector<2x384xf32> to vector<2x256xf32>
    %13 = vector.extract_strided_slice %10 {offsets = [0, 0], sizes = [2, 256], strides = [1, 1]} : vector<2x384xf32> to vector<2x256xf32>
    %14 = arith.addf %12, %13 : vector<2x256xf32>
    %15 = arith.negf %14 : vector<2x256xf32>
    %16 = math.exp %15 : vector<2x256xf32>
    %cst_7 = arith.constant 1.000000e+00 : f32
    %17 = vector.broadcast %cst_7 : f32 to vector<2x256xf32>
    %18 = arith.addf %17, %16 : vector<2x256xf32>
    %19 = arith.divf %17, %18 : vector<2x256xf32>
    %20 = vector.extract_strided_slice %19 {offsets = [0, 0], sizes = [2, 128], strides = [1, 1]} : vector<2x256xf32> to vector<2x128xf32>
    %21 = vector.extract_strided_slice %19 {offsets = [0, 128], sizes = [2, 128], strides = [1, 1]} : vector<2x256xf32> to vector<2x128xf32>
    %22 = vector.extract_strided_slice %9 {offsets = [0, 256], sizes = [2, 128], strides = [1, 1]} : vector<2x384xf32> to vector<2x128xf32>
    %23 = vector.extract_strided_slice %10 {offsets = [0, 256], sizes = [2, 128], strides = [1, 1]} : vector<2x384xf32> to vector<2x128xf32>
    %24 = arith.addf %23, %2 : vector<2x128xf32>
    %25 = arith.mulf %20, %24 : vector<2x128xf32>
    %26 = arith.addf %22, %25 : vector<2x128xf32>
    %27 = math.tanh %26 : vector<2x128xf32>
    %28 = arith.subf %11, %27 : vector<2x128xf32>
    %29 = arith.mulf %21, %28 : vector<2x128xf32>
    %30 = arith.addf %27, %29 : vector<2x128xf32>
    %c0_8 = arith.constant 0 : index
    %c0_9 = arith.constant 0 : index
    %31 = vector.load %arg3[%c0_8, %c0_9] : memref<128x384xf32, #tpu.memory_space<vmem>>, vector<128x384xf32>
    %cst_10 = arith.constant dense<0.000000e+00> : vector<2x384xf32>
    %32 = tpu.matmul %30, %31, %cst_10 {dimension_numbers = #tpu.dot_dimension_numbers<[1], [0], [0], [1], [0, 0, 1, 1], [], []>} : vector<2x128xf32>, vector<128x384xf32>, vector<2x384xf32> -> vector<2x384xf32>
    %c0_11 = arith.constant 0 : index
    %c1_12 = arith.constant 1 : index
    %33 = memref.load %arg1[%c0_11, %c1_12] : memref<2x8xi32, #tpu.memory_space<smem>>
    %34 = arith.index_cast %33 : i32 to index
    %c0_13 = arith.constant 0 : index
    %35 = vector.load %arg2[%34, %c0_13] : memref<50x384xf32, #tpu.memory_space<vmem>>, vector<1x384xf32>
    %c1_14 = arith.constant 1 : index
    %c1_15 = arith.constant 1 : index
    %36 = memref.load %arg1[%c1_14, %c1_15] : memref<2x8xi32, #tpu.memory_space<smem>>
    %37 = arith.index_cast %36 : i32 to index
    %c0_16 = arith.constant 0 : index
    %38 = vector.load %arg2[%37, %c0_16] : memref<50x384xf32, #tpu.memory_space<vmem>>, vector<1x384xf32>
    %39 = tpu.concatenate %35, %38 in 0 : vector<1x384xf32>, vector<1x384xf32> -> vector<2x384xf32>
    %40 = vector.extract_strided_slice %39 {offsets = [0, 0], sizes = [2, 256], strides = [1, 1]} : vector<2x384xf32> to vector<2x256xf32>
    %41 = vector.extract_strided_slice %32 {offsets = [0, 0], sizes = [2, 256], strides = [1, 1]} : vector<2x384xf32> to vector<2x256xf32>
    %42 = arith.addf %40, %41 : vector<2x256xf32>
    %43 = arith.negf %42 : vector<2x256xf32>
    %44 = math.exp %43 : vector<2x256xf32>
    %cst_17 = arith.constant 1.000000e+00 : f32
    %45 = vector.broadcast %cst_17 : f32 to vector<2x256xf32>
    %46 = arith.addf %45, %44 : vector<2x256xf32>
    %47 = arith.divf %45, %46 : vector<2x256xf32>
    %48 = vector.extract_strided_slice %47 {offsets = [0, 0], sizes = [2, 128], strides = [1, 1]} : vector<2x256xf32> to vector<2x128xf32>
    %49 = vector.extract_strided_slice %47 {offsets = [0, 128], sizes = [2, 128], strides = [1, 1]} : vector<2x256xf32> to vector<2x128xf32>
    %50 = vector.extract_strided_slice %39 {offsets = [0, 256], sizes = [2, 128], strides = [1, 1]} : vector<2x384xf32> to vector<2x128xf32>
    %51 = vector.extract_strided_slice %32 {offsets = [0, 256], sizes = [2, 128], strides = [1, 1]} : vector<2x384xf32> to vector<2x128xf32>
    %52 = arith.addf %51, %2 : vector<2x128xf32>
    %53 = arith.mulf %48, %52 : vector<2x128xf32>
    %54 = arith.addf %50, %53 : vector<2x128xf32>
    %55 = math.tanh %54 : vector<2x128xf32>
    %56 = arith.subf %30, %55 : vector<2x128xf32>
    %57 = arith.mulf %49, %56 : vector<2x128xf32>
    %58 = arith.addf %55, %57 : vector<2x128xf32>
    %c0_18 = arith.constant 0 : index
    %c0_19 = arith.constant 0 : index
    %59 = vector.load %arg3[%c0_18, %c0_19] : memref<128x384xf32, #tpu.memory_space<vmem>>, vector<128x384xf32>
    %cst_20 = arith.constant dense<0.000000e+00> : vector<2x384xf32>
    %60 = tpu.matmul %58, %59, %cst_20 {dimension_numbers = #tpu.dot_dimension_numbers<[1], [0], [0], [1], [0, 0, 1, 1], [], []>} : vector<2x128xf32>, vector<128x384xf32>, vector<2x384xf32> -> vector<2x384xf32>
    %c0_21 = arith.constant 0 : index
    %c2 = arith.constant 2 : index
    %61 = memref.load %arg1[%c0_21, %c2] : memref<2x8xi32, #tpu.memory_space<smem>>
    %62 = arith.index_cast %61 : i32 to index
    %c0_22 = arith.constant 0 : index
    %63 = vector.load %arg2[%62, %c0_22] : memref<50x384xf32, #tpu.memory_space<vmem>>, vector<1x384xf32>
    %c1_23 = arith.constant 1 : index
    %c2_24 = arith.constant 2 : index
    %64 = memref.load %arg1[%c1_23, %c2_24] : memref<2x8xi32, #tpu.memory_space<smem>>
    %65 = arith.index_cast %64 : i32 to index
    %c0_25 = arith.constant 0 : index
    %66 = vector.load %arg2[%65, %c0_25] : memref<50x384xf32, #tpu.memory_space<vmem>>, vector<1x384xf32>
    %67 = tpu.concatenate %63, %66 in 0 : vector<1x384xf32>, vector<1x384xf32> -> vector<2x384xf32>
    %68 = vector.extract_strided_slice %67 {offsets = [0, 0], sizes = [2, 256], strides = [1, 1]} : vector<2x384xf32> to vector<2x256xf32>
    %69 = vector.extract_strided_slice %60 {offsets = [0, 0], sizes = [2, 256], strides = [1, 1]} : vector<2x384xf32> to vector<2x256xf32>
    %70 = arith.addf %68, %69 : vector<2x256xf32>
    %71 = arith.negf %70 : vector<2x256xf32>
    %72 = math.exp %71 : vector<2x256xf32>
    %cst_26 = arith.constant 1.000000e+00 : f32
    %73 = vector.broadcast %cst_26 : f32 to vector<2x256xf32>
    %74 = arith.addf %73, %72 : vector<2x256xf32>
    %75 = arith.divf %73, %74 : vector<2x256xf32>
    %76 = vector.extract_strided_slice %75 {offsets = [0, 0], sizes = [2, 128], strides = [1, 1]} : vector<2x256xf32> to vector<2x128xf32>
    %77 = vector.extract_strided_slice %75 {offsets = [0, 128], sizes = [2, 128], strides = [1, 1]} : vector<2x256xf32> to vector<2x128xf32>
    %78 = vector.extract_strided_slice %67 {offsets = [0, 256], sizes = [2, 128], strides = [1, 1]} : vector<2x384xf32> to vector<2x128xf32>
    %79 = vector.extract_strided_slice %60 {offsets = [0, 256], sizes = [2, 128], strides = [1, 1]} : vector<2x384xf32> to vector<2x128xf32>
    %80 = arith.addf %79, %2 : vector<2x128xf32>
    %81 = arith.mulf %76, %80 : vector<2x128xf32>
    %82 = arith.addf %78, %81 : vector<2x128xf32>
    %83 = math.tanh %82 : vector<2x128xf32>
    %84 = arith.subf %58, %83 : vector<2x128xf32>
    %85 = arith.mulf %77, %84 : vector<2x128xf32>
    %86 = arith.addf %83, %85 : vector<2x128xf32>
    %c0_27 = arith.constant 0 : index
    %c0_28 = arith.constant 0 : index
    %87 = vector.load %arg3[%c0_27, %c0_28] : memref<128x384xf32, #tpu.memory_space<vmem>>, vector<128x384xf32>
    %cst_29 = arith.constant dense<0.000000e+00> : vector<2x384xf32>
    %88 = tpu.matmul %86, %87, %cst_29 {dimension_numbers = #tpu.dot_dimension_numbers<[1], [0], [0], [1], [0, 0, 1, 1], [], []>} : vector<2x128xf32>, vector<128x384xf32>, vector<2x384xf32> -> vector<2x384xf32>
    %c0_30 = arith.constant 0 : index
    %c3 = arith.constant 3 : index
    %89 = memref.load %arg1[%c0_30, %c3] : memref<2x8xi32, #tpu.memory_space<smem>>
    %90 = arith.index_cast %89 : i32 to index
    %c0_31 = arith.constant 0 : index
    %91 = vector.load %arg2[%90, %c0_31] : memref<50x384xf32, #tpu.memory_space<vmem>>, vector<1x384xf32>
    %c1_32 = arith.constant 1 : index
    %c3_33 = arith.constant 3 : index
    %92 = memref.load %arg1[%c1_32, %c3_33] : memref<2x8xi32, #tpu.memory_space<smem>>
    %93 = arith.index_cast %92 : i32 to index
    %c0_34 = arith.constant 0 : index
    %94 = vector.load %arg2[%93, %c0_34] : memref<50x384xf32, #tpu.memory_space<vmem>>, vector<1x384xf32>
    %95 = tpu.concatenate %91, %94 in 0 : vector<1x384xf32>, vector<1x384xf32> -> vector<2x384xf32>
    %96 = vector.extract_strided_slice %95 {offsets = [0, 0], sizes = [2, 256], strides = [1, 1]} : vector<2x384xf32> to vector<2x256xf32>
    %97 = vector.extract_strided_slice %88 {offsets = [0, 0], sizes = [2, 256], strides = [1, 1]} : vector<2x384xf32> to vector<2x256xf32>
    %98 = arith.addf %96, %97 : vector<2x256xf32>
    %99 = arith.negf %98 : vector<2x256xf32>
    %100 = math.exp %99 : vector<2x256xf32>
    %cst_35 = arith.constant 1.000000e+00 : f32
    %101 = vector.broadcast %cst_35 : f32 to vector<2x256xf32>
    %102 = arith.addf %101, %100 : vector<2x256xf32>
    %103 = arith.divf %101, %102 : vector<2x256xf32>
    %104 = vector.extract_strided_slice %103 {offsets = [0, 0], sizes = [2, 128], strides = [1, 1]} : vector<2x256xf32> to vector<2x128xf32>
    %105 = vector.extract_strided_slice %103 {offsets = [0, 128], sizes = [2, 128], strides = [1, 1]} : vector<2x256xf32> to vector<2x128xf32>
    %106 = vector.extract_strided_slice %95 {offsets = [0, 256], sizes = [2, 128], strides = [1, 1]} : vector<2x384xf32> to vector<2x128xf32>
    %107 = vector.extract_strided_slice %88 {offsets = [0, 256], sizes = [2, 128], strides = [1, 1]} : vector<2x384xf32> to vector<2x128xf32>
    %108 = arith.addf %107, %2 : vector<2x128xf32>
    %109 = arith.mulf %104, %108 : vector<2x128xf32>
    %110 = arith.addf %106, %109 : vector<2x128xf32>
    %111 = math.tanh %110 : vector<2x128xf32>
    %112 = arith.subf %86, %111 : vector<2x128xf32>
    %113 = arith.mulf %105, %112 : vector<2x128xf32>
    %114 = arith.addf %111, %113 : vector<2x128xf32>
    %c0_36 = arith.constant 0 : index
    %c0_37 = arith.constant 0 : index
    %115 = vector.load %arg3[%c0_36, %c0_37] : memref<128x384xf32, #tpu.memory_space<vmem>>, vector<128x384xf32>
    %cst_38 = arith.constant dense<0.000000e+00> : vector<2x384xf32>
    %116 = tpu.matmul %114, %115, %cst_38 {dimension_numbers = #tpu.dot_dimension_numbers<[1], [0], [0], [1], [0, 0, 1, 1], [], []>} : vector<2x128xf32>, vector<128x384xf32>, vector<2x384xf32> -> vector<2x384xf32>
    %c0_39 = arith.constant 0 : index
    %c4 = arith.constant 4 : index
    %117 = memref.load %arg1[%c0_39, %c4] : memref<2x8xi32, #tpu.memory_space<smem>>
    %118 = arith.index_cast %117 : i32 to index
    %c0_40 = arith.constant 0 : index
    %119 = vector.load %arg2[%118, %c0_40] : memref<50x384xf32, #tpu.memory_space<vmem>>, vector<1x384xf32>
    %c1_41 = arith.constant 1 : index
    %c4_42 = arith.constant 4 : index
    %120 = memref.load %arg1[%c1_41, %c4_42] : memref<2x8xi32, #tpu.memory_space<smem>>
    %121 = arith.index_cast %120 : i32 to index
    %c0_43 = arith.constant 0 : index
    %122 = vector.load %arg2[%121, %c0_43] : memref<50x384xf32, #tpu.memory_space<vmem>>, vector<1x384xf32>
    %123 = tpu.concatenate %119, %122 in 0 : vector<1x384xf32>, vector<1x384xf32> -> vector<2x384xf32>
    %124 = vector.extract_strided_slice %123 {offsets = [0, 0], sizes = [2, 256], strides = [1, 1]} : vector<2x384xf32> to vector<2x256xf32>
    %125 = vector.extract_strided_slice %116 {offsets = [0, 0], sizes = [2, 256], strides = [1, 1]} : vector<2x384xf32> to vector<2x256xf32>
    %126 = arith.addf %124, %125 : vector<2x256xf32>
    %127 = arith.negf %126 : vector<2x256xf32>
    %128 = math.exp %127 : vector<2x256xf32>
    %cst_44 = arith.constant 1.000000e+00 : f32
    %129 = vector.broadcast %cst_44 : f32 to vector<2x256xf32>
    %130 = arith.addf %129, %128 : vector<2x256xf32>
    %131 = arith.divf %129, %130 : vector<2x256xf32>
    %132 = vector.extract_strided_slice %131 {offsets = [0, 0], sizes = [2, 128], strides = [1, 1]} : vector<2x256xf32> to vector<2x128xf32>
    %133 = vector.extract_strided_slice %131 {offsets = [0, 128], sizes = [2, 128], strides = [1, 1]} : vector<2x256xf32> to vector<2x128xf32>
    %134 = vector.extract_strided_slice %123 {offsets = [0, 256], sizes = [2, 128], strides = [1, 1]} : vector<2x384xf32> to vector<2x128xf32>
    %135 = vector.extract_strided_slice %116 {offsets = [0, 256], sizes = [2, 128], strides = [1, 1]} : vector<2x384xf32> to vector<2x128xf32>
    %136 = arith.addf %135, %2 : vector<2x128xf32>
    %137 = arith.mulf %132, %136 : vector<2x128xf32>
    %138 = arith.addf %134, %137 : vector<2x128xf32>
    %139 = math.tanh %138 : vector<2x128xf32>
    %140 = arith.subf %114, %139 : vector<2x128xf32>
    %141 = arith.mulf %133, %140 : vector<2x128xf32>
    %142 = arith.addf %139, %141 : vector<2x128xf32>
    %c0_45 = arith.constant 0 : index
    %c0_46 = arith.constant 0 : index
    %143 = vector.load %arg3[%c0_45, %c0_46] : memref<128x384xf32, #tpu.memory_space<vmem>>, vector<128x384xf32>
    %cst_47 = arith.constant dense<0.000000e+00> : vector<2x384xf32>
    %144 = tpu.matmul %142, %143, %cst_47 {dimension_numbers = #tpu.dot_dimension_numbers<[1], [0], [0], [1], [0, 0, 1, 1], [], []>} : vector<2x128xf32>, vector<128x384xf32>, vector<2x384xf32> -> vector<2x384xf32>
    %c0_48 = arith.constant 0 : index
    %c5 = arith.constant 5 : index
    %145 = memref.load %arg1[%c0_48, %c5] : memref<2x8xi32, #tpu.memory_space<smem>>
    %146 = arith.index_cast %145 : i32 to index
    %c0_49 = arith.constant 0 : index
    %147 = vector.load %arg2[%146, %c0_49] : memref<50x384xf32, #tpu.memory_space<vmem>>, vector<1x384xf32>
    %c1_50 = arith.constant 1 : index
    %c5_51 = arith.constant 5 : index
    %148 = memref.load %arg1[%c1_50, %c5_51] : memref<2x8xi32, #tpu.memory_space<smem>>
    %149 = arith.index_cast %148 : i32 to index
    %c0_52 = arith.constant 0 : index
    %150 = vector.load %arg2[%149, %c0_52] : memref<50x384xf32, #tpu.memory_space<vmem>>, vector<1x384xf32>
    %151 = tpu.concatenate %147, %150 in 0 : vector<1x384xf32>, vector<1x384xf32> -> vector<2x384xf32>
    %152 = vector.extract_strided_slice %151 {offsets = [0, 0], sizes = [2, 256], strides = [1, 1]} : vector<2x384xf32> to vector<2x256xf32>
    %153 = vector.extract_strided_slice %144 {offsets = [0, 0], sizes = [2, 256], strides = [1, 1]} : vector<2x384xf32> to vector<2x256xf32>
    %154 = arith.addf %152, %153 : vector<2x256xf32>
    %155 = arith.negf %154 : vector<2x256xf32>
    %156 = math.exp %155 : vector<2x256xf32>
    %cst_53 = arith.constant 1.000000e+00 : f32
    %157 = vector.broadcast %cst_53 : f32 to vector<2x256xf32>
    %158 = arith.addf %157, %156 : vector<2x256xf32>
    %159 = arith.divf %157, %158 : vector<2x256xf32>
    %160 = vector.extract_strided_slice %159 {offsets = [0, 0], sizes = [2, 128], strides = [1, 1]} : vector<2x256xf32> to vector<2x128xf32>
    %161 = vector.extract_strided_slice %159 {offsets = [0, 128], sizes = [2, 128], strides = [1, 1]} : vector<2x256xf32> to vector<2x128xf32>
    %162 = vector.extract_strided_slice %151 {offsets = [0, 256], sizes = [2, 128], strides = [1, 1]} : vector<2x384xf32> to vector<2x128xf32>
    %163 = vector.extract_strided_slice %144 {offsets = [0, 256], sizes = [2, 128], strides = [1, 1]} : vector<2x384xf32> to vector<2x128xf32>
    %164 = arith.addf %163, %2 : vector<2x128xf32>
    %165 = arith.mulf %160, %164 : vector<2x128xf32>
    %166 = arith.addf %162, %165 : vector<2x128xf32>
    %167 = math.tanh %166 : vector<2x128xf32>
    %168 = arith.subf %142, %167 : vector<2x128xf32>
    %169 = arith.mulf %161, %168 : vector<2x128xf32>
    %170 = arith.addf %167, %169 : vector<2x128xf32>
    %c0_54 = arith.constant 0 : index
    %c0_55 = arith.constant 0 : index
    %171 = vector.load %arg3[%c0_54, %c0_55] : memref<128x384xf32, #tpu.memory_space<vmem>>, vector<128x384xf32>
    %cst_56 = arith.constant dense<0.000000e+00> : vector<2x384xf32>
    %172 = tpu.matmul %170, %171, %cst_56 {dimension_numbers = #tpu.dot_dimension_numbers<[1], [0], [0], [1], [0, 0, 1, 1], [], []>} : vector<2x128xf32>, vector<128x384xf32>, vector<2x384xf32> -> vector<2x384xf32>
    %c0_57 = arith.constant 0 : index
    %c6 = arith.constant 6 : index
    %173 = memref.load %arg1[%c0_57, %c6] : memref<2x8xi32, #tpu.memory_space<smem>>
    %174 = arith.index_cast %173 : i32 to index
    %c0_58 = arith.constant 0 : index
    %175 = vector.load %arg2[%174, %c0_58] : memref<50x384xf32, #tpu.memory_space<vmem>>, vector<1x384xf32>
    %c1_59 = arith.constant 1 : index
    %c6_60 = arith.constant 6 : index
    %176 = memref.load %arg1[%c1_59, %c6_60] : memref<2x8xi32, #tpu.memory_space<smem>>
    %177 = arith.index_cast %176 : i32 to index
    %c0_61 = arith.constant 0 : index
    %178 = vector.load %arg2[%177, %c0_61] : memref<50x384xf32, #tpu.memory_space<vmem>>, vector<1x384xf32>
    %179 = tpu.concatenate %175, %178 in 0 : vector<1x384xf32>, vector<1x384xf32> -> vector<2x384xf32>
    %180 = vector.extract_strided_slice %179 {offsets = [0, 0], sizes = [2, 256], strides = [1, 1]} : vector<2x384xf32> to vector<2x256xf32>
    %181 = vector.extract_strided_slice %172 {offsets = [0, 0], sizes = [2, 256], strides = [1, 1]} : vector<2x384xf32> to vector<2x256xf32>
    %182 = arith.addf %180, %181 : vector<2x256xf32>
    %183 = arith.negf %182 : vector<2x256xf32>
    %184 = math.exp %183 : vector<2x256xf32>
    %cst_62 = arith.constant 1.000000e+00 : f32
    %185 = vector.broadcast %cst_62 : f32 to vector<2x256xf32>
    %186 = arith.addf %185, %184 : vector<2x256xf32>
    %187 = arith.divf %185, %186 : vector<2x256xf32>
    %188 = vector.extract_strided_slice %187 {offsets = [0, 0], sizes = [2, 128], strides = [1, 1]} : vector<2x256xf32> to vector<2x128xf32>
    %189 = vector.extract_strided_slice %187 {offsets = [0, 128], sizes = [2, 128], strides = [1, 1]} : vector<2x256xf32> to vector<2x128xf32>
    %190 = vector.extract_strided_slice %179 {offsets = [0, 256], sizes = [2, 128], strides = [1, 1]} : vector<2x384xf32> to vector<2x128xf32>
    %191 = vector.extract_strided_slice %172 {offsets = [0, 256], sizes = [2, 128], strides = [1, 1]} : vector<2x384xf32> to vector<2x128xf32>
    %192 = arith.addf %191, %2 : vector<2x128xf32>
    %193 = arith.mulf %188, %192 : vector<2x128xf32>
    %194 = arith.addf %190, %193 : vector<2x128xf32>
    %195 = math.tanh %194 : vector<2x128xf32>
    %196 = arith.subf %170, %195 : vector<2x128xf32>
    %197 = arith.mulf %189, %196 : vector<2x128xf32>
    %198 = arith.addf %195, %197 : vector<2x128xf32>
    %c0_63 = arith.constant 0 : index
    %c0_64 = arith.constant 0 : index
    %199 = vector.load %arg3[%c0_63, %c0_64] : memref<128x384xf32, #tpu.memory_space<vmem>>, vector<128x384xf32>
    %cst_65 = arith.constant dense<0.000000e+00> : vector<2x384xf32>
    %200 = tpu.matmul %198, %199, %cst_65 {dimension_numbers = #tpu.dot_dimension_numbers<[1], [0], [0], [1], [0, 0, 1, 1], [], []>} : vector<2x128xf32>, vector<128x384xf32>, vector<2x384xf32> -> vector<2x384xf32>
    %c0_66 = arith.constant 0 : index
    %c7 = arith.constant 7 : index
    %201 = memref.load %arg1[%c0_66, %c7] : memref<2x8xi32, #tpu.memory_space<smem>>
    %202 = arith.index_cast %201 : i32 to index
    %c0_67 = arith.constant 0 : index
    %203 = vector.load %arg2[%202, %c0_67] : memref<50x384xf32, #tpu.memory_space<vmem>>, vector<1x384xf32>
    %c1_68 = arith.constant 1 : index
    %c7_69 = arith.constant 7 : index
    %204 = memref.load %arg1[%c1_68, %c7_69] : memref<2x8xi32, #tpu.memory_space<smem>>
    %205 = arith.index_cast %204 : i32 to index
    %c0_70 = arith.constant 0 : index
    %206 = vector.load %arg2[%205, %c0_70] : memref<50x384xf32, #tpu.memory_space<vmem>>, vector<1x384xf32>
    %207 = tpu.concatenate %203, %206 in 0 : vector<1x384xf32>, vector<1x384xf32> -> vector<2x384xf32>
    %208 = vector.extract_strided_slice %207 {offsets = [0, 0], sizes = [2, 256], strides = [1, 1]} : vector<2x384xf32> to vector<2x256xf32>
    %209 = vector.extract_strided_slice %200 {offsets = [0, 0], sizes = [2, 256], strides = [1, 1]} : vector<2x384xf32> to vector<2x256xf32>
    %210 = arith.addf %208, %209 : vector<2x256xf32>
    %211 = arith.negf %210 : vector<2x256xf32>
    %212 = math.exp %211 : vector<2x256xf32>
    %cst_71 = arith.constant 1.000000e+00 : f32
    %213 = vector.broadcast %cst_71 : f32 to vector<2x256xf32>
    %214 = arith.addf %213, %212 : vector<2x256xf32>
    %215 = arith.divf %213, %214 : vector<2x256xf32>
    %216 = vector.extract_strided_slice %215 {offsets = [0, 0], sizes = [2, 128], strides = [1, 1]} : vector<2x256xf32> to vector<2x128xf32>
    %217 = vector.extract_strided_slice %215 {offsets = [0, 128], sizes = [2, 128], strides = [1, 1]} : vector<2x256xf32> to vector<2x128xf32>
    %218 = vector.extract_strided_slice %207 {offsets = [0, 256], sizes = [2, 128], strides = [1, 1]} : vector<2x384xf32> to vector<2x128xf32>
    %219 = vector.extract_strided_slice %200 {offsets = [0, 256], sizes = [2, 128], strides = [1, 1]} : vector<2x384xf32> to vector<2x128xf32>
    %220 = arith.addf %219, %2 : vector<2x128xf32>
    %221 = arith.mulf %216, %220 : vector<2x128xf32>
    %222 = arith.addf %218, %221 : vector<2x128xf32>
    %223 = math.tanh %222 : vector<2x128xf32>
    %224 = arith.subf %198, %223 : vector<2x128xf32>
    %225 = arith.mulf %217, %224 : vector<2x128xf32>
    %226 = arith.addf %223, %225 : vector<2x128xf32>
    %227 = vector.extract_strided_slice %226 {offsets = [0, 0], sizes = [2, 32], strides = [1, 1]} : vector<2x128xf32> to vector<2x32xf32>
    %c0_72 = arith.constant 0 : index
    %c0_73 = arith.constant 0 : index
    %228 = vector.load %arg5[%c0_72, %c0_73] : memref<2x32xf32, #tpu.memory_space<vmem>>, vector<2x32xf32>
    tpu.vector_store %arg5[%c0_72, %c0_73], %227 {strides = array<i32>} : memref<2x32xf32, #tpu.memory_space<vmem>>, vector<2x32xf32>,
    return
  }
  func.func @transform_0(%arg0: i32, %arg1: memref<2x8xi32, #tpu.memory_space<smem>>) -> (i32, i32) {
    %c0_i32 = arith.constant 0 : i32
    %c0_i32_0 = arith.constant 0 : i32
    %c0_i32_1 = arith.constant 0 : i32
    return %c0_i32, %c0_i32_0 : i32, i32
  }
  func.func @transform_1(%arg0: i32, %arg1: memref<2x8xi32, #tpu.memory_space<smem>>) -> (i32, i32) {
    %c0_i32 = arith.constant 0 : i32
    %c0_i32_0 = arith.constant 0 : i32
    %c0_i32_1 = arith.constant 0 : i32
    return %c0_i32, %c0_i32_0 : i32, i32
  }
  func.func @transform_2(%arg0: i32, %arg1: memref<2x8xi32, #tpu.memory_space<smem>>) -> (i32, i32) {
    %c0_i32 = arith.constant 0 : i32
    %c0_i32_0 = arith.constant 0 : i32
    %c0_i32_1 = arith.constant 0 : i32
    return %c0_i32, %c0_i32_0 : i32, i32
  }
  func.func @transform_3(%arg0: i32, %arg1: memref<2x8xi32, #tpu.memory_space<smem>>) -> (i32, i32) {
    %c0_i32 = arith.constant 0 : i32
    %c0_i32_0 = arith.constant 0 : i32
    %c0_i32_1 = arith.constant 0 : i32
    return %c0_i32, %c0_i32_0 : i32, i32
  }
}

</mosaic_0001>

<llo_original>
// kernel: tpu_custom_call.1
$region0: #{tpu_custom_call.1}
  #allocation0 [shape = 'u32[]', space=smem, size = 0x4, offset = 0x4, fixed_abs, tag = 'smem constant byte address 0x4 - core index']
  #allocation1 [shape = 'u32[144,128]{1,0:T(1,128)}', space=vmem, size = 0x12000, scoped, tag = 'internal scratch']
  #allocation2 [shape = 's32[1]{0}', space=sflag, size = 0x4, scoped, tag = 'scoped memory for tpu_custom_call.1']
  #allocation3 [shape = 'u8[1024]{0}', space=smem, size = 0x400, scoped, tag = 'prefetched SMEM operand 0']
  %s0 = inlined_call_operand.hbm [shape: s32[2,8], index: 0, kind: input, shape index: {}]
  %s1 = inlined_call_operand.hbm [shape: f32[50,384], index: 1, kind: input, shape index: {}]
  %s2 = inlined_call_operand.hbm [shape: f32[128,384], index: 2, kind: input, shape index: {}]
  %s3 = inlined_call_operand.vmem [shape: f32[1,128], index: 3, kind: input, shape index: {}]
  %s4 = inlined_call_operand.hbm [shape: f32[2,32], index: 4, kind: output, shape index: {}]
  %s5 = sld [smem:[#allocation0]]
  $region30: #{tpu_custom_call.1} parent=0
    _
  %s7 = ssub.s32 1, %s5
  %s8 = scalar_select 0, %s7, %s5
  %10 = dma.hbm_to_smem %s0, 32, [#allocation3], [#allocation2]
  %11 = dma.done [#allocation2], 32
  %12 = sfence
  $region1: #{tpu_custom_call.1} parent=0
    #allocation4 [shape = 'u8[86016]{0}', space=vmem, size = 0x15000, scoped, tag = 'input window, operand 1, single buffered']
    #allocation5 [shape = 's32[1]{0}', space=sflag, size = 0x4, scoped, tag = 'scoped memory for tpu_custom_call.1']
    #allocation6 [shape = 's32[1]{0}', space=sflag, size = 0x4, scoped, tag = 'scoped memory for tpu_custom_call.1']
    #allocation7 [shape = 'u8[196608]{0}', space=vmem, size = 0x30000, scoped, tag = 'input window, operand 2, single buffered']
    #allocation8 [shape = 's32[1]{0}', space=sflag, size = 0x4, scoped, tag = 'scoped memory for tpu_custom_call.1']
    #allocation9 [shape = 'u8[1024]{0}', space=vmem, size = 0x400, scoped, tag = 'output window, operand 0, single buffered']
    %13 = vsyncpa [#allocation5], 0
    %14 = vsyncpa [#allocation8], 0
    %15 = vsyncpa [#allocation6], 0
    // Predicated region
    $region2: #{tpu_custom_call.1} parent=1 // pred_check
      _
    $region3: #{tpu_custom_call.1} parent=1 // pred_check_branch
      %17 = sbr.rel (0) target = $region5
    $region4: #{tpu_custom_call.1} parent=1 // pred_region
      %s19 = ssub.s32 2688, 2688
      %20 = vsyncadd [#allocation5], %s19
      %s21 = sshll.u32 [#allocation4], 4
      %s22 = int_to_ptr.vmem [resolvable:$true] %s21
      %27 = dma.hbm_to_vmem [thread:$0]  %s1, 2688, %s22, [#allocation5], 384, 384, 24
    $region5: #{tpu_custom_call.1} parent=1 // pred_fallthru
      _
    // Predicated region
    $region6: #{tpu_custom_call.1} parent=1 // pred_check
      _
    $region7: #{tpu_custom_call.1} parent=1 // pred_check_branch
      %29 = sbr.rel (0) target = $region9
    $region8: #{tpu_custom_call.1} parent=1 // pred_region
      %s31 = ssub.s32 6144, 6144
      %32 = vsyncadd [#allocation8], %s31
      %s33 = sshll.u32 [#allocation7], 4
      %s34 = int_to_ptr.vmem [resolvable:$true] %s33
      %39 = dma.hbm_to_vmem [thread:$0]  %s2, 6144, %s34, [#allocation8], 384, 384, 24
    $region9: #{tpu_custom_call.1} parent=1 // pred_fallthru
      _
    // Predicated region
    $region10: #{tpu_custom_call.1} parent=1 // pred_check
      _
    $region11: #{tpu_custom_call.1} parent=1 // pred_check_branch
      %41 = sbr.rel (0) target = $region13
    $region12: #{tpu_custom_call.1} parent=1 // pred_region
      _
    $region13: #{tpu_custom_call.1} parent=1 // pred_fallthru
      _
    // Predicated region
    $region14: #{tpu_custom_call.1} parent=1 // pred_check
      _
    $region15: #{tpu_custom_call.1} parent=1 // pred_check_branch
      %43 = sbr.rel (0) target = $region17
    $region16: #{tpu_custom_call.1} parent=1 // pred_region
      %44 = dma.done [#allocation5], 2688
    $region17: #{tpu_custom_call.1} parent=1 // pred_fallthru
      _
    // Predicated region
    $region18: #{tpu_custom_call.1} parent=1 // pred_check
      _
    $region19: #{tpu_custom_call.1} parent=1 // pred_check_branch
      %46 = sbr.rel (0) target = $region21
    $region20: #{tpu_custom_call.1} parent=1 // pred_region
      %47 = dma.done [#allocation8], 6144
    $region21: #{tpu_custom_call.1} parent=1 // pred_fallthru
      _
    %v48 = vld [vmem:[%s3] sm:$0x1]
    %v50 = vlaneseq
    %v51 = vshrl.u32 %v50, 7
    %v52 = vsub.s32 0, %v51
    %v53 = vrot.slane %v48, %v52
    %s55 = sld [smem:[#allocation3]]
    %s56 = sshra.s32 %s55, 3
    %s57 = sand.u32 %s55, 7
    %s58 = sshra.s32 %s55, 3
    %s59 = sand.u32 %s55, 7
    %s60 = smul.u32 %s56, 3
    %s61 = smul.u32 %s60, 8
    %s62 = sadd.s32 %s61, %s59
    %s63 = scalar_lea.vmem [#allocation4], %s62
    %v64 = vld [vmem:[%s63] ss:$8 sm:$0x7]
    %s65 = sld [smem:[#allocation3 + $0x80]]
    %s66 = sshra.s32 %s65, 3
    %s67 = sand.u32 %s65, 7
    %s68 = sshra.s32 %s65, 3
    %s69 = sand.u32 %s65, 7
    %s70 = smul.u32 %s66, 3
    %s71 = smul.u32 %s70, 8
    %s72 = sadd.s32 %s71, %s69
    %s73 = scalar_lea.vmem [#allocation4], %s72
    %v74 = vld [vmem:[%s73] ss:$8 sm:$0x7]
    %v76 = vlaneseq
    %v77 = vshrl.u32 %v76, 7
    %v78 = vsub.s32 0, %v77
    %v79 = vrot.slane %v64, %v78
    %v80 = vlaneseq
    %v81 = vshrl.u32 %v80, 7
    %v82 = vsub.s32 1, %v81
    %v83 = vrot.slane %v64, %v82
    %v84 = vlaneseq
    %v85 = vshrl.u32 %v84, 7
    %v86 = vsub.s32 2, %v85
    %v87 = vrot.slane %v64, %v86
    %v92 = vlaneseq
    %v93 = vshrl.u32 %v92, 7
    %v94 = vsub.s32 0, %v93
    %v95 = vrot.slane %v74, %v94
    %v96 = vlaneseq
    %v97 = vshrl.u32 %v96, 7
    %v98 = vsub.s32 1, %v97
    %v99 = vrot.slane %v74, %v98
    %v100 = vlaneseq
    %v101 = vshrl.u32 %v100, 7
    %v102 = vsub.s32 2, %v101
    %v103 = vrot.slane %v74, %v102
    %vm107 = vcmask 1040384
    %v108 = vsel %vm107, %v79, %v95
    %v109 = vsel %vm107, %v83, %v99
    %v110 = vsel %vm107, %v87, %v103
    %v111 = vadd.f32 %v108, 0.0
    %v112 = vadd.f32 %v109, 0.0
    %v113 = vxor.u32 %v111, 2147483648
    %v114 = vxor.u32 %v112, 2147483648
    %v115 = vmul.f32 %v113, 1.442695
    %v116 = vpow.pop %v115
    %v117 = vmul.f32 %v114, 1.442695
    %v118 = vpow.pop %v117
    %v119 = vadd.f32 %v116, 1.0
    %v120 = vadd.f32 %v118, 1.0
    %v121 = vrcp.pop %v119
    %v122 = vmul.f32 1.0, %v121
    %v123 = vrcp.pop %v120
    %v124 = vmul.f32 1.0, %v123
    %v125 = vadd.f32 %v53, 0.0
    %v126 = vmul.f32 %v122, %v125
    %v127 = vadd.f32 %v110, %v126
    %v128 = vtanh.pop %v127
    %v129 = vsub.f32 0.0, %v128
    %v130 = vmul.f32 %v124, %v129
    %v131 = vadd.f32 %v128, %v130
    %v132 = vld [vmem:[#allocation7] sm:$0xff]
    %v133 = vld [vmem:[#allocation7 + $0x8] sm:$0xff]
    %v134 = vld [vmem:[#allocation7 + $0x10] sm:$0xff]
    %v135 = vld [vmem:[#allocation7 + $0x18] sm:$0xff]
    %v136 = vld [vmem:[#allocation7 + $0x20] sm:$0xff]
    %v137 = vld [vmem:[#allocation7 + $0x28] sm:$0xff]
    %v138 = vld [vmem:[#allocation7 + $0x30] sm:$0xff]
    %v139 = vld [vmem:[#allocation7 + $0x38] sm:$0xff]
    %v140 = vld [vmem:[#allocation7 + $0x40] sm:$0xff]
    %v141 = vld [vmem:[#allocation7 + $0x48] sm:$0xff]
    %v142 = vld [vmem:[#allocation7 + $0x50] sm:$0xff]
    %v143 = vld [vmem:[#allocation7 + $0x58] sm:$0xff]
    %v144 = vld [vmem:[#allocation7 + $0x60] sm:$0xff]
    %v145 = vld [vmem:[#allocation7 + $0x68] sm:$0xff]
    %v146 = vld [vmem:[#allocation7 + $0x70] sm:$0xff]
    %v147 = vld [vmem:[#allocation7 + $0x78] sm:$0xff]
    %v148 = vld [vmem:[#allocation7 + $0x80] sm:$0xff]
    %v149 = vld [vmem:[#allocation7 + $0x88] sm:$0xff]
    %v150 = vld [vmem:[#allocation7 + $0x90] sm:$0xff]
    %v151 = vld [vmem:[#allocation7 + $0x98] sm:$0xff]
    %v152 = vld [vmem:[#allocation7 + $0xa0] sm:$0xff]
    %v153 = vld [vmem:[#allocation7 + $0xa8] sm:$0xff]
    %v154 = vld [vmem:[#allocation7 + $0xb0] sm:$0xff]
    %v155 = vld [vmem:[#allocation7 + $0xb8] sm:$0xff]
    %v156 = vld [vmem:[#allocation7 + $0xc0] sm:$0xff]
    %v157 = vld [vmem:[#allocation7 + $0xc8] sm:$0xff]
    %v158 = vld [vmem:[#allocation7 + $0xd0] sm:$0xff]
    %v159 = vld [vmem:[#allocation7 + $0xd8] sm:$0xff]
    %v160 = vld [vmem:[#allocation7 + $0xe0] sm:$0xff]
    %v161 = vld [vmem:[#allocation7 + $0xe8] sm:$0xff]
    %v162 = vld [vmem:[#allocation7 + $0xf0] sm:$0xff]
    %v163 = vld [vmem:[#allocation7 + $0xf8] sm:$0xff]
    %v164 = vld [vmem:[#allocation7 + $0x100] sm:$0xff]
    %v165 = vld [vmem:[#allocation7 + $0x108] sm:$0xff]
    %v166 = vld [vmem:[#allocation7 + $0x110] sm:$0xff]
    %v167 = vld [vmem:[#allocation7 + $0x118] sm:$0xff]
    %v168 = vld [vmem:[#allocation7 + $0x120] sm:$0xff]
    %v169 = vld [vmem:[#allocation7 + $0x128] sm:$0xff]
    %v170 = vld [vmem:[#allocation7 + $0x130] sm:$0xff]
    %v171 = vld [vmem:[#allocation7 + $0x138] sm:$0xff]
    %v172 = vld [vmem:[#allocation7 + $0x140] sm:$0xff]
    %v173 = vld [vmem:[#allocation7 + $0x148] sm:$0xff]
    %v174 = vld [vmem:[#allocation7 + $0x150] sm:$0xff]
    %v175 = vld [vmem:[#allocation7 + $0x158] sm:$0xff]
    %v176 = vld [vmem:[#allocation7 + $0x160] sm:$0xff]
    %v177 = vld [vmem:[#allocation7 + $0x168] sm:$0xff]
    %v178 = vld [vmem:[#allocation7 + $0x170] sm:$0xff]
    %v179 = vld [vmem:[#allocation7 + $0x178] sm:$0xff]
    %180 = vmatprep.subr.mxu0 %v133
    %181 = vmatpush1.msra.mxu0 %v132
    %182 = vmatprep.subr.mxu0 %v136
    %183 = vmatpush1.msra.mxu0 %v135
    %184 = vmatprep.subr.mxu0 %v139
    %185 = vmatpush1.msra.mxu0 %v138
    %186 = vmatprep.subr.mxu0 %v142
    %187 = vmatpush1.msra.mxu0 %v141
    %188 = vmatprep.subr.mxu0 %v145
    %189 = vmatpush1.msra.mxu0 %v144
    %190 = vmatprep.subr.mxu0 %v148
    %191 = vmatpush1.msra.mxu0 %v147
    %192 = vmatprep.subr.mxu0 %v151
    %193 = vmatpush1.msra.mxu0 %v150
    %194 = vmatprep.subr.mxu0 %v154
    %195 = vmatpush1.msra.mxu0 %v153
    %196 = vmatprep.subr.mxu0 %v157
    %197 = vmatpush1.msra.mxu0 %v156
    %198 = vmatprep.subr.mxu0 %v160
    %199 = vmatpush1.msra.mxu0 %v159
    %200 = vmatprep.subr.mxu0 %v163
    %201 = vmatpush1.msra.mxu0 %v162
    %202 = vmatprep.subr.mxu0 %v166
    %203 = vmatpush1.msra.mxu0 %v165
    %204 = vmatprep.subr.mxu0 %v169
    %205 = vmatpush1.msra.mxu0 %v168
    %206 = vmatprep.subr.mxu0 %v172
    %207 = vmatpush1.msra.mxu0 %v171
    %208 = vmatprep.subr.mxu0 %v175
    %209 = vmatpush1.msra.mxu0 %v174
    %210 = vmatprep.subr.mxu0 %v178
    %211 = vmatpush1.msra.mxu0 %v177
    %212 = vmatprep.subr.mxu0 0.0
    %213 = vmatpush1.msra.mxu0 0.0
    %214 = vmatprep.subr.mxu0 0.0
    %215 = vmatpush1.msra.mxu0 0.0
    %216 = vmatprep.subr.mxu0 0.0
    %217 = vmatpush1.msra.mxu0 0.0
    %218 = vmatprep.subr.mxu0 0.0
    %219 = vmatpush1.msra.mxu0 0.0
    %220 = vmatprep.subr.mxu0 0.0
    %221 = vmatpush1.msra.mxu0 0.0
    %222 = vmatprep.subr.mxu0 0.0
    %223 = vmatpush1.msra.mxu0 0.0
    %224 = vmatprep.subr.mxu0 0.0
    %225 = vmatpush1.msra.mxu0 0.0
    %226 = vmatprep.subr.mxu0 0.0
    %227 = vmatpush1.msra.mxu0 0.0
    %228 = vmatprep.subr.mxu0 0.0
    %229 = vmatpush1.msra.mxu0 0.0
    %230 = vmatprep.subr.mxu0 0.0
    %231 = vmatpush1.msra.mxu0 0.0
    %232 = vmatprep.subr.mxu0 0.0
    %233 = vmatpush1.msra.mxu0 0.0
    %234 = vmatprep.subr.mxu0 0.0
    %235 = vmatpush1.msra.mxu0 0.0
    %236 = vmatprep.subr.mxu0 0.0
    %237 = vmatpush1.msra.mxu0 0.0
    %238 = vmatprep.subr.mxu0 0.0
    %239 = vmatpush1.msra.mxu0 0.0
    %240 = vmatprep.subr.mxu0 0.0
    %241 = vmatpush1.msra.mxu0 0.0
    %242 = vmatprep.subr.mxu0 0.0
    %243 = vmatpush1.msra.mxu0 0.0
    %244 = vmatprep.mubr.f32.mxu0 0.0
    %245 = vmatmul.mubr.f32.gmra.mrb[0].mxu0 %v131
    %v246 = vpop.f32.mrb[0].mxu0
    %v247 = vadd.f32 0.0, %v246
    %v248 = vpop.f32.mrb[0].mxu0
    %v249 = vadd.f32 0.0, %v248
    %250 = vdwg.mxu0
    %251 = vmatprep.subr.mxu0 0.0
    %252 = vmatpush1.msra.mxu0 %v134
    %253 = vmatprep.subr.mxu0 0.0
    %254 = vmatpush1.msra.mxu0 %v137
    %255 = vmatprep.subr.mxu0 0.0
    %256 = vmatpush1.msra.mxu0 %v140
    %257 = vmatprep.subr.mxu0 0.0
    %258 = vmatpush1.msra.mxu0 %v143
    %259 = vmatprep.subr.mxu0 0.0
    %260 = vmatpush1.msra.mxu0 %v146
    %261 = vmatprep.subr.mxu0 0.0
    %262 = vmatpush1.msra.mxu0 %v149
    %263 = vmatprep.subr.mxu0 0.0
    %264 = vmatpush1.msra.mxu0 %v152
    %265 = vmatprep.subr.mxu0 0.0
    %266 = vmatpush1.msra.mxu0 %v155
    %267 = vmatprep.subr.mxu0 0.0
    %268 = vmatpush1.msra.mxu0 %v158
    %269 = vmatprep.subr.mxu0 0.0
    %270 = vmatpush1.msra.mxu0 %v161
    %271 = vmatprep.subr.mxu0 0.0
    %272 = vmatpush1.msra.mxu0 %v164
    %273 = vmatprep.subr.mxu0 0.0
    %274 = vmatpush1.msra.mxu0 %v167
    %275 = vmatprep.subr.mxu0 0.0
    %276 = vmatpush1.msra.mxu0 %v170
    %277 = vmatprep.subr.mxu0 0.0
    %278 = vmatpush1.msra.mxu0 %v173
    %279 = vmatprep.subr.mxu0 0.0
    %280 = vmatpush1.msra.mxu0 %v176
    %281 = vmatprep.subr.mxu0 0.0
    %282 = vmatpush1.msra.mxu0 %v179
    %283 = vmatprep.subr.mxu0 0.0
    %284 = vmatpush1.msra.mxu0 0.0
    %285 = vmatprep.subr.mxu0 0.0
    %286 = vmatpush1.msra.mxu0 0.0
    %287 = vmatprep.subr.mxu0 0.0
    %288 = vmatpush1.msra.mxu0 0.0
    %289 = vmatprep.subr.mxu0 0.0
    %290 = vmatpush1.msra.mxu0 0.0
    %291 = vmatprep.subr.mxu0 0.0
    %292 = vmatpush1.msra.mxu0 0.0
    %293 = vmatprep.subr.mxu0 0.0
    %294 = vmatpush1.msra.mxu0 0.0
    %295 = vmatprep.subr.mxu0 0.0
    %296 = vmatpush1.msra.mxu0 0.0
    %297 = vmatprep.subr.mxu0 0.0
    %298 = vmatpush1.msra.mxu0 0.0
    %299 = vmatprep.subr.mxu0 0.0
    %300 = vmatpush1.msra.mxu0 0.0
    %301 = vmatprep.subr.mxu0 0.0
    %302 = vmatpush1.msra.mxu0 0.0
    %303 = vmatprep.subr.mxu0 0.0
    %304 = vmatpush1.msra.mxu0 0.0
    %305 = vmatprep.subr.mxu0 0.0
    %306 = vmatpush1.msra.mxu0 0.0
    %307 = vmatprep.subr.mxu0 0.0
    %308 = vmatpush1.msra.mxu0 0.0
    %309 = vmatprep.subr.mxu0 0.0
    %310 = vmatpush1.msra.mxu0 0.0
    %311 = vmatprep.subr.mxu0 0.0
    %312 = vmatpush1.msra.mxu0 0.0
    %313 = vmatprep.subr.mxu0 0.0
    %314 = vmatpush1.msra.mxu0 0.0
    %315 = vmatprep.mubr.f32.mxu0 0.0
    %316 = vmatmul.mubr.f32.gmra.mrb[0].mxu0 %v131
    %v317 = vpop.f32.mrb[0].mxu0
    %v318 = vadd.f32 0.0, %v317
    %v319 = vpop.f32.mrb[0].mxu0
    %320 = vdwg.mxu0
    %s321 = sld [smem:[#allocation3 + $0x1]]
    %s322 = sshra.s32 %s321, 3
    %s323 = sand.u32 %s321, 7
    %s324 = sshra.s32 %s321, 3
    %s325 = sand.u32 %s321, 7
    %s326 = smul.u32 %s322, 3
    %s327 = smul.u32 %s326, 8
    %s328 = sadd.s32 %s327, %s325
    %s329 = scalar_lea.vmem [#allocation4], %s328
    %v330 = vld [vmem:[%s329] ss:$8 sm:$0x7]
    %s331 = sld [smem:[#allocation3 + $0x81]]
    %s332 = sshra.s32 %s331, 3
    %s333 = sand.u32 %s331, 7
    %s334 = sshra.s32 %s331, 3
    %s335 = sand.u32 %s331, 7
    %s336 = smul.u32 %s332, 3
    %s337 = smul.u32 %s336, 8
    %s338 = sadd.s32 %s337, %s335
    %s339 = scalar_lea.vmem [#allocation4], %s338
    %v340 = vld [vmem:[%s339] ss:$8 sm:$0x7]
    %v342 = vlaneseq
    %v343 = vshrl.u32 %v342, 7
    %v344 = vsub.s32 0, %v343
    %v345 = vrot.slane %v330, %v344
    %v346 = vlaneseq
    %v347 = vshrl.u32 %v346, 7
    %v348 = vsub.s32 1, %v347
    %v349 = vrot.slane %v330, %v348
    %v350 = vlaneseq
    %v351 = vshrl.u32 %v350, 7
    %v352 = vsub.s32 2, %v351
    %v353 = vrot.slane %v330, %v352
    %v358 = vlaneseq
    %v359 = vshrl.u32 %v358, 7
    %v360 = vsub.s32 0, %v359
    %v361 = vrot.slane %v340, %v360
    %v362 = vlaneseq
    %v363 = vshrl.u32 %v362, 7
    %v364 = vsub.s32 1, %v363
    %v365 = vrot.slane %v340, %v364
    %v366 = vlaneseq
    %v367 = vshrl.u32 %v366, 7
    %v368 = vsub.s32 2, %v367
    %v369 = vrot.slane %v340, %v368
    %v373 = vsel %vm107, %v345, %v361
    %v374 = vsel %vm107, %v349, %v365
    %v375 = vsel %vm107, %v353, %v369
    %v376 = vadd.f32 %v373, %v247
    %v377 = vadd.f32 %v374, %v249
    %v378 = vxor.u32 %v376, 2147483648
    %v379 = vxor.u32 %v377, 2147483648
    %v380 = vmul.f32 %v378, 1.442695
    %v381 = vpow.pop %v380
    %v382 = vmul.f32 %v379, 1.442695
    %v383 = vpow.pop %v382
    %v384 = vadd.f32 %v381, 1.0
    %v385 = vadd.f32 %v383, 1.0
    %v386 = vrcp.pop %v384
    %v387 = vmul.f32 1.0, %v386
    %v388 = vrcp.pop %v385
    %v389 = vmul.f32 1.0, %v388
    %v390 = vadd.f32 %v318, %v53
    %v391 = vmul.f32 %v387, %v390
    %v392 = vadd.f32 %v375, %v391
    %v393 = vtanh.pop %v392
    %v394 = vsub.f32 %v131, %v393
    %v395 = vmul.f32 %v389, %v394
    %v396 = vadd.f32 %v393, %v395
    %397 = vmatprep.subr.mxu0 %v133
    %398 = vmatpush1.msra.mxu0 %v132
    %399 = vmatprep.subr.mxu0 %v136
    %400 = vmatpush1.msra.mxu0 %v135
    %401 = vmatprep.subr.mxu0 %v139
    %402 = vmatpush1.msra.mxu0 %v138
    %403 = vmatprep.subr.mxu0 %v142
    %404 = vmatpush1.msra.mxu0 %v141
    %405 = vmatprep.subr.mxu0 %v145
    %406 = vmatpush1.msra.mxu0 %v144
    %407 = vmatprep.subr.mxu0 %v148
    %408 = vmatpush1.msra.mxu0 %v147
    %409 = vmatprep.subr.mxu0 %v151
    %410 = vmatpush1.msra.mxu0 %v150
    %411 = vmatprep.subr.mxu0 %v154
    %412 = vmatpush1.msra.mxu0 %v153
    %413 = vmatprep.subr.mxu0 %v157
    %414 = vmatpush1.msra.mxu0 %v156
    %415 = vmatprep.subr.mxu0 %v160
    %416 = vmatpush1.msra.mxu0 %v159
    %417 = vmatprep.subr.mxu0 %v163
    %418 = vmatpush1.msra.mxu0 %v162
    %419 = vmatprep.subr.mxu0 %v166
    %420 = vmatpush1.msra.mxu0 %v165
    %421 = vmatprep.subr.mxu0 %v169
    %422 = vmatpush1.msra.mxu0 %v168
    %423 = vmatprep.subr.mxu0 %v172
    %424 = vmatpush1.msra.mxu0 %v171
    %425 = vmatprep.subr.mxu0 %v175
    %426 = vmatpush1.msra.mxu0 %v174
    %427 = vmatprep.subr.mxu0 %v178
    %428 = vmatpush1.msra.mxu0 %v177
    %429 = vmatprep.subr.mxu0 0.0
    %430 = vmatpush1.msra.mxu0 0.0
    %431 = vmatprep.subr.mxu0 0.0
    %432 = vmatpush1.msra.mxu0 0.0
    %433 = vmatprep.subr.mxu0 0.0
    %434 = vmatpush1.msra.mxu0 0.0
    %435 = vmatprep.subr.mxu0 0.0
    %436 = vmatpush1.msra.mxu0 0.0
    %437 = vmatprep.subr.mxu0 0.0
    %438 = vmatpush1.msra.mxu0 0.0
    %439 = vmatprep.subr.mxu0 0.0
    %440 = vmatpush1.msra.mxu0 0.0
    %441 = vmatprep.subr.mxu0 0.0
    %442 = vmatpush1.msra.mxu0 0.0
    %443 = vmatprep.subr.mxu0 0.0
    %444 = vmatpush1.msra.mxu0 0.0
    %445 = vmatprep.subr.mxu0 0.0
    %446 = vmatpush1.msra.mxu0 0.0
    %447 = vmatprep.subr.mxu0 0.0
    %448 = vmatpush1.msra.mxu0 0.0
    %449 = vmatprep.subr.mxu0 0.0
    %450 = vmatpush1.msra.mxu0 0.0
    %451 = vmatprep.subr.mxu0 0.0
    %452 = vmatpush1.msra.mxu0 0.0
    %453 = vmatprep.subr.mxu0 0.0
    %454 = vmatpush1.msra.mxu0 0.0
    %455 = vmatprep.subr.mxu0 0.0
    %456 = vmatpush1.msra.mxu0 0.0
    %457 = vmatprep.subr.mxu0 0.0
    %458 = vmatpush1.msra.mxu0 0.0
    %459 = vmatprep.subr.mxu0 0.0
    %460 = vmatpush1.msra.mxu0 0.0
    %461 = vmatprep.mubr.f32.mxu0 0.0
    %462 = vmatmul.mubr.f32.gmra.mrb[0].mxu0 %v396
    %v463 = vpop.f32.mrb[0].mxu0
    %v464 = vadd.f32 0.0, %v463
    %v465 = vpop.f32.mrb[0].mxu0
    %v466 = vadd.f32 0.0, %v465
    %467 = vdwg.mxu0
    %468 = vmatprep.subr.mxu0 0.0
    %469 = vmatpush1.msra.mxu0 %v134
    %470 = vmatprep.subr.mxu0 0.0
    %471 = vmatpush1.msra.mxu0 %v137
    %472 = vmatprep.subr.mxu0 0.0
    %473 = vmatpush1.msra.mxu0 %v140
    %474 = vmatprep.subr.mxu0 0.0
    %475 = vmatpush1.msra.mxu0 %v143
    %476 = vmatprep.subr.mxu0 0.0
    %477 = vmatpush1.msra.mxu0 %v146
    %478 = vmatprep.subr.mxu0 0.0
    %479 = vmatpush1.msra.mxu0 %v149
    %480 = vmatprep.subr.mxu0 0.0
    %481 = vmatpush1.msra.mxu0 %v152
    %482 = vmatprep.subr.mxu0 0.0
    %483 = vmatpush1.msra.mxu0 %v155
    %484 = vmatprep.subr.mxu0 0.0
    %485 = vmatpush1.msra.mxu0 %v158
    %486 = vmatprep.subr.mxu0 0.0
    %487 = vmatpush1.msra.mxu0 %v161
    %488 = vmatprep.subr.mxu0 0.0
    %489 = vmatpush1.msra.mxu0 %v164
    %490 = vmatprep.subr.mxu0 0.0
    %491 = vmatpush1.msra.mxu0 %v167
    %492 = vmatprep.subr.mxu0 0.0
    %493 = vmatpush1.msra.mxu0 %v170
    %494 = vmatprep.subr.mxu0 0.0
    %495 = vmatpush1.msra.mxu0 %v173
    %496 = vmatprep.subr.mxu0 0.0
    %497 = vmatpush1.msra.mxu0 %v176
    %498 = vmatprep.subr.mxu0 0.0
    %499 = vmatpush1.msra.mxu0 %v179
    %500 = vmatprep.subr.mxu0 0.0
    %501 = vmatpush1.msra.mxu0 0.0
    %502 = vmatprep.subr.mxu0 0.0
    %503 = vmatpush1.msra.mxu0 0.0
    %504 = vmatprep.subr.mxu0 0.0
    %505 = vmatpush1.msra.mxu0 0.0
    %506 = vmatprep.subr.mxu0 0.0
    %507 = vmatpush1.msra.mxu0 0.0
    %508 = vmatprep.subr.mxu0 0.0
    %509 = vmatpush1.msra.mxu0 0.0
    %510 = vmatprep.subr.mxu0 0.0
    %511 = vmatpush1.msra.mxu0 0.0
    %512 = vmatprep.subr.mxu0 0.0
    %513 = vmatpush1.msra.mxu0 0.0
    %514 = vmatprep.subr.mxu0 0.0
    %515 = vmatpush1.msra.mxu0 0.0
    %516 = vmatprep.subr.mxu0 0.0
    %517 = vmatpush1.msra.mxu0 0.0
    %518 = vmatprep.subr.mxu0 0.0
    %519 = vmatpush1.msra.mxu0 0.0
    %520 = vmatprep.subr.mxu0 0.0
    %521 = vmatpush1.msra.mxu0 0.0
    %522 = vmatprep.subr.mxu0 0.0
    %523 = vmatpush1.msra.mxu0 0.0
    %524 = vmatprep.subr.mxu0 0.0
    %525 = vmatpush1.msra.mxu0 0.0
    %526 = vmatprep.subr.mxu0 0.0
    %527 = vmatpush1.msra.mxu0 0.0
    %528 = vmatprep.subr.mxu0 0.0
    %529 = vmatpush1.msra.mxu0 0.0
    %530 = vmatprep.subr.mxu0 0.0
    %531 = vmatpush1.msra.mxu0 0.0
    %532 = vmatprep.mubr.f32.mxu0 0.0
    %533 = vmatmul.mubr.f32.gmra.mrb[0].mxu0 %v396
    %v534 = vpop.f32.mrb[0].mxu0
    %v535 = vadd.f32 0.0, %v534
    %v536 = vpop.f32.mrb[0].mxu0
    %537 = vdwg.mxu0
    %s538 = sld [smem:[#allocation3 + $0x2]]
    %s539 = sshra.s32 %s538, 3
    %s540 = sand.u32 %s538, 7
    %s541 = sshra.s32 %s538, 3
    %s542 = sand.u32 %s538, 7
    %s543 = smul.u32 %s539, 3
    %s544 = smul.u32 %s543, 8
    %s545 = sadd.s32 %s544, %s542
    %s546 = scalar_lea.vmem [#allocation4], %s545
    %v547 = vld [vmem:[%s546] ss:$8 sm:$0x7]
    %s548 = sld [smem:[#allocation3 + $0x82]]
    %s549 = sshra.s32 %s548, 3
    %s550 = sand.u32 %s548, 7
    %s551 = sshra.s32 %s548, 3
    %s552 = sand.u32 %s548, 7
    %s553 = smul.u32 %s549, 3
    %s554 = smul.u32 %s553, 8
    %s555 = sadd.s32 %s554, %s552
    %s556 = scalar_lea.vmem [#allocation4], %s555
    %v557 = vld [vmem:[%s556] ss:$8 sm:$0x7]
    %v559 = vlaneseq
    %v560 = vshrl.u32 %v559, 7
    %v561 = vsub.s32 0, %v560
    %v562 = vrot.slane %v547, %v561
    %v563 = vlaneseq
    %v564 = vshrl.u32 %v563, 7
    %v565 = vsub.s32 1, %v564
    %v566 = vrot.slane %v547, %v565
    %v567 = vlaneseq
    %v568 = vshrl.u32 %v567, 7
    %v569 = vsub.s32 2, %v568
    %v570 = vrot.slane %v547, %v569
    %v575 = vlaneseq
    %v576 = vshrl.u32 %v575, 7
    %v577 = vsub.s32 0, %v576
    %v578 = vrot.slane %v557, %v577
    %v579 = vlaneseq
    %v580 = vshrl.u32 %v579, 7
    %v581 = vsub.s32 1, %v580
    %v582 = vrot.slane %v557, %v581
    %v583 = vlaneseq
    %v584 = vshrl.u32 %v583, 7
    %v585 = vsub.s32 2, %v584
    %v586 = vrot.slane %v557, %v585
    %v590 = vsel %vm107, %v562, %v578
    %v591 = vsel %vm107, %v566, %v582
    %v592 = vsel %vm107, %v570, %v586
    %v593 = vadd.f32 %v590, %v464
    %v594 = vadd.f32 %v591, %v466
    %v595 = vxor.u32 %v593, 2147483648
    %v596 = vxor.u32 %v594, 2147483648
    %v597 = vmul.f32 %v595, 1.442695
    %v598 = vpow.pop %v597
    %v599 = vmul.f32 %v596, 1.442695
    %v600 = vpow.pop %v599
    %v601 = vadd.f32 %v598, 1.0
    %v602 = vadd.f32 %v600, 1.0
    %v603 = vrcp.pop %v601
    %v604 = vmul.f32 1.0, %v603
    %v605 = vrcp.pop %v602
    %v606 = vmul.f32 1.0, %v605
    %v607 = vadd.f32 %v535, %v53
    %v608 = vmul.f32 %v604, %v607
    %v609 = vadd.f32 %v592, %v608
    %v610 = vtanh.pop %v609
    %v611 = vsub.f32 %v396, %v610
    %v612 = vmul.f32 %v606, %v611
    %v613 = vadd.f32 %v610, %v612
    %614 = vmatprep.subr.mxu0 %v133
    %615 = vmatpush1.msra.mxu0 %v132
    %616 = vmatprep.subr.mxu0 %v136
    %617 = vmatpush1.msra.mxu0 %v135
    %618 = vmatprep.subr.mxu0 %v139
    %619 = vmatpush1.msra.mxu0 %v138
    %620 = vmatprep.subr.mxu0 %v142
    %621 = vmatpush1.msra.mxu0 %v141
    %622 = vmatprep.subr.mxu0 %v145
    %623 = vmatpush1.msra.mxu0 %v144
    %624 = vmatprep.subr.mxu0 %v148
    %625 = vmatpush1.msra.mxu0 %v147
    %626 = vmatprep.subr.mxu0 %v151
    %627 = vmatpush1.msra.mxu0 %v150
    %628 = vmatprep.subr.mxu0 %v154
    %629 = vmatpush1.msra.mxu0 %v153
    %630 = vmatprep.subr.mxu0 %v157
    %631 = vmatpush1.msra.mxu0 %v156
    %632 = vmatprep.subr.mxu0 %v160
    %633 = vmatpush1.msra.mxu0 %v159
    %634 = vmatprep.subr.mxu0 %v163
    %635 = vmatpush1.msra.mxu0 %v162
    %636 = vmatprep.subr.mxu0 %v166
    %637 = vmatpush1.msra.mxu0 %v165
    %638 = vmatprep.subr.mxu0 %v169
    %639 = vmatpush1.msra.mxu0 %v168
    %640 = vmatprep.subr.mxu0 %v172
    %641 = vmatpush1.msra.mxu0 %v171
    %642 = vmatprep.subr.mxu0 %v175
    %643 = vmatpush1.msra.mxu0 %v174
    %644 = vmatprep.subr.mxu0 %v178
    %645 = vmatpush1.msra.mxu0 %v177
    %646 = vmatprep.subr.mxu0 0.0
    %647 = vmatpush1.msra.mxu0 0.0
    %648 = vmatprep.subr.mxu0 0.0
    %649 = vmatpush1.msra.mxu0 0.0
    %650 = vmatprep.subr.mxu0 0.0
    %651 = vmatpush1.msra.mxu0 0.0
    %652 = vmatprep.subr.mxu0 0.0
    %653 = vmatpush1.msra.mxu0 0.0
    %654 = vmatprep.subr.mxu0 0.0
    %655 = vmatpush1.msra.mxu0 0.0
    %656 = vmatprep.subr.mxu0 0.0
    %657 = vmatpush1.msra.mxu0 0.0
    %658 = vmatprep.subr.mxu0 0.0
    %659 = vmatpush1.msra.mxu0 0.0
    %660 = vmatprep.subr.mxu0 0.0
    %661 = vmatpush1.msra.mxu0 0.0
    %662 = vmatprep.subr.mxu0 0.0
    %663 = vmatpush1.msra.mxu0 0.0
    %664 = vmatprep.subr.mxu0 0.0
    %665 = vmatpush1.msra.mxu0 0.0
    %666 = vmatprep.subr.mxu0 0.0
    %667 = vmatpush1.msra.mxu0 0.0
    %668 = vmatprep.subr.mxu0 0.0
    %669 = vmatpush1.msra.mxu0 0.0
    %670 = vmatprep.subr.mxu0 0.0
    %671 = vmatpush1.msra.mxu0 0.0
    %672 = vmatprep.subr.mxu0 0.0
    %673 = vmatpush1.msra.mxu0 0.0
    %674 = vmatprep.subr.mxu0 0.0
    %675 = vmatpush1.msra.mxu0 0.0
    %676 = vmatprep.subr.mxu0 0.0
    %677 = vmatpush1.msra.mxu0 0.0
    %678 = vmatprep.mubr.f32.mxu0 0.0
    %679 = vmatmul.mubr.f32.gmra.mrb[0].mxu0 %v613
    %v680 = vpop.f32.mrb[0].mxu0
    %v681 = vadd.f32 0.0, %v680
    %v682 = vpop.f32.mrb[0].mxu0
    %v683 = vadd.f32 0.0, %v682
    %684 = vdwg.mxu0
    %685 = vmatprep.subr.mxu0 0.0
    %686 = vmatpush1.msra.mxu0 %v134
    %687 = vmatprep.subr.mxu0 0.0
    %688 = vmatpush1.msra.mxu0 %v137
    %689 = vmatprep.subr.mxu0 0.0
    %690 = vmatpush1.msra.mxu0 %v140
    %691 = vmatprep.subr.mxu0 0.0
    %692 = vmatpush1.msra.mxu0 %v143
    %693 = vmatprep.subr.mxu0 0.0
    %694 = vmatpush1.msra.mxu0 %v146
    %695 = vmatprep.subr.mxu0 0.0
    %696 = vmatpush1.msra.mxu0 %v149
    %697 = vmatprep.subr.mxu0 0.0
    %698 = vmatpush1.msra.mxu0 %v152
    %699 = vmatprep.subr.mxu0 0.0
    %700 = vmatpush1.msra.mxu0 %v155
    %701 = vmatprep.subr.mxu0 0.0
    %702 = vmatpush1.msra.mxu0 %v158
    %703 = vmatprep.subr.mxu0 0.0
    %704 = vmatpush1.msra.mxu0 %v161
    %705 = vmatprep.subr.mxu0 0.0
    %706 = vmatpush1.msra.mxu0 %v164
    %707 = vmatprep.subr.mxu0 0.0
    %708 = vmatpush1.msra.mxu0 %v167
    %709 = vmatprep.subr.mxu0 0.0
    %710 = vmatpush1.msra.mxu0 %v170
    %711 = vmatprep.subr.mxu0 0.0
    %712 = vmatpush1.msra.mxu0 %v173
    %713 = vmatprep.subr.mxu0 0.0
    %714 = vmatpush1.msra.mxu0 %v176
    %715 = vmatprep.subr.mxu0 0.0
    %716 = vmatpush1.msra.mxu0 %v179
    %717 = vmatprep.subr.mxu0 0.0
    %718 = vmatpush1.msra.mxu0 0.0
    %719 = vmatprep.subr.mxu0 0.0
    %720 = vmatpush1.msra.mxu0 0.0
    %721 = vmatprep.subr.mxu0 0.0
    %722 = vmatpush1.msra.mxu0 0.0
    %723 = vmatprep.subr.mxu0 0.0
    %724 = vmatpush1.msra.mxu0 0.0
    %725 = vmatprep.subr.mxu0 0.0
    %726 = vmatpush1.msra.mxu0 0.0
    %727 = vmatprep.subr.mxu0 0.0
    %728 = vmatpush1.msra.mxu0 0.0
    %729 = vmatprep.subr.mxu0 0.0
    %730 = vmatpush1.msra.mxu0 0.0
    %731 = vmatprep.subr.mxu0 0.0
    %732 = vmatpush1.msra.mxu0 0.0
    %733 = vmatprep.subr.mxu0 0.0
    %734 = vmatpush1.msra.mxu0 0.0
    %735 = vmatprep.subr.mxu0 0.0
    %736 = vmatpush1.msra.mxu0 0.0
    %737 = vmatprep.subr.mxu0 0.0
    %738 = vmatpush1.msra.mxu0 0.0
    %739 = vmatprep.subr.mxu0 0.0
    %740 = vmatpush1.msra.mxu0 0.0
    %741 = vmatprep.subr.mxu0 0.0
    %742 = vmatpush1.msra.mxu0 0.0
    %743 = vmatprep.subr.mxu0 0.0
    %744 = vmatpush1.msra.mxu0 0.0
    %745 = vmatprep.subr.mxu0 0.0
    %746 = vmatpush1.msra.mxu0 0.0
    %747 = vmatprep.subr.mxu0 0.0
    %748 = vmatpush1.msra.mxu0 0.0
    %749 = vmatprep.mubr.f32.mxu0 0.0
    %750 = vmatmul.mubr.f32.gmra.mrb[0].mxu0 %v613
    %v751 = vpop.f32.mrb[0].mxu0
    %v752 = vadd.f32 0.0, %v751
    %v753 = vpop.f32.mrb[0].mxu0
    %754 = vdwg.mxu0
    %s755 = sld [smem:[#allocation3 + $0x3]]
    %s756 = sshra.s32 %s755, 3
    %s757 = sand.u32 %s755, 7
    %s758 = sshra.s32 %s755, 3
    %s759 = sand.u32 %s755, 7
    %s760 = smul.u32 %s756, 3
    %s761 = smul.u32 %s760, 8
    %s762 = sadd.s32 %s761, %s759
    %s763 = scalar_lea.vmem [#allocation4], %s762
    %v764 = vld [vmem:[%s763] ss:$8 sm:$0x7]
    %s765 = sld [smem:[#allocation3 + $0x83]]
    %s766 = sshra.s32 %s765, 3
    %s767 = sand.u32 %s765, 7
    %s768 = sshra.s32 %s765, 3
    %s769 = sand.u32 %s765, 7
    %s770 = smul.u32 %s766, 3
    %s771 = smul.u32 %s770, 8
    %s772 = sadd.s32 %s771, %s769
    %s773 = scalar_lea.vmem [#allocation4], %s772
    %v774 = vld [vmem:[%s773] ss:$8 sm:$0x7]
    %v776 = vlaneseq
    %v777 = vshrl.u32 %v776, 7
    %v778 = vsub.s32 0, %v777
    %v779 = vrot.slane %v764, %v778
    %v780 = vlaneseq
    %v781 = vshrl.u32 %v780, 7
    %v782 = vsub.s32 1, %v781
    %v783 = vrot.slane %v764, %v782
    %v784 = vlaneseq
    %v785 = vshrl.u32 %v784, 7
    %v786 = vsub.s32 2, %v785
    %v787 = vrot.slane %v764, %v786
    %v792 = vlaneseq
    %v793 = vshrl.u32 %v792, 7
    %v794 = vsub.s32 0, %v793
    %v795 = vrot.slane %v774, %v794
    %v796 = vlaneseq
    %v797 = vshrl.u32 %v796, 7
    %v798 = vsub.s32 1, %v797
    %v799 = vrot.slane %v774, %v798
    %v800 = vlaneseq
    %v801 = vshrl.u32 %v800, 7
    %v802 = vsub.s32 2, %v801
    %v803 = vrot.slane %v774, %v802
    %v807 = vsel %vm107, %v779, %v795
    %v808 = vsel %vm107, %v783, %v799
    %v809 = vsel %vm107, %v787, %v803
    %v810 = vadd.f32 %v807, %v681
    %v811 = vadd.f32 %v808, %v683
    %v812 = vxor.u32 %v810, 2147483648
    %v813 = vxor.u32 %v811, 2147483648
    %v814 = vmul.f32 %v812, 1.442695
    %v815 = vpow.pop %v814
    %v816 = vmul.f32 %v813, 1.442695
    %v817 = vpow.pop %v816
    %v818 = vadd.f32 %v815, 1.0
    %v819 = vadd.f32 %v817, 1.0
    %v820 = vrcp.pop %v818
    %v821 = vmul.f32 1.0, %v820
    %v822 = vrcp.pop %v819
    %v823 = vmul.f32 1.0, %v822
    %v824 = vadd.f32 %v752, %v53
    %v825 = vmul.f32 %v821, %v824
    %v826 = vadd.f32 %v809, %v825
    %v827 = vtanh.pop %v826
    %v828 = vsub.f32 %v613, %v827
    %v829 = vmul.f32 %v823, %v828
    %v830 = vadd.f32 %v827, %v829
    %831 = vmatprep.subr.mxu0 %v133
    %832 = vmatpush1.msra.mxu0 %v132
    %833 = vmatprep.subr.mxu0 %v136
    %834 = vmatpush1.msra.mxu0 %v135
    %835 = vmatprep.subr.mxu0 %v139
    %836 = vmatpush1.msra.mxu0 %v138
    %837 = vmatprep.subr.mxu0 %v142
    %838 = vmatpush1.msra.mxu0 %v141
    %839 = vmatprep.subr.mxu0 %v145
    %840 = vmatpush1.msra.mxu0 %v144
    %841 = vmatprep.subr.mxu0 %v148
    %842 = vmatpush1.msra.mxu0 %v147
    %843 = vmatprep.subr.mxu0 %v151
    %844 = vmatpush1.msra.mxu0 %v150
    %845 = vmatprep.subr.mxu0 %v154
    %846 = vmatpush1.msra.mxu0 %v153
    %847 = vmatprep.subr.mxu0 %v157
    %848 = vmatpush1.msra.mxu0 %v156
    %849 = vmatprep.subr.mxu0 %v160
    %850 = vmatpush1.msra.mxu0 %v159
    %851 = vmatprep.subr.mxu0 %v163
    %852 = vmatpush1.msra.mxu0 %v162
    %853 = vmatprep.subr.mxu0 %v166
    %854 = vmatpush1.msra.mxu0 %v165
    %855 = vmatprep.subr.mxu0 %v169
    %856 = vmatpush1.msra.mxu0 %v168
    %857 = vmatprep.subr.mxu0 %v172
    %858 = vmatpush1.msra.mxu0 %v171
    %859 = vmatprep.subr.mxu0 %v175
    %860 = vmatpush1.msra.mxu0 %v174
    %861 = vmatprep.subr.mxu0 %v178
    %862 = vmatpush1.msra.mxu0 %v177
    %863 = vmatprep.subr.mxu0 0.0
    %864 = vmatpush1.msra.mxu0 0.0
    %865 = vmatprep.subr.mxu0 0.0
    %866 = vmatpush1.msra.mxu0 0.0
    %867 = vmatprep.subr.mxu0 0.0
    %868 = vmatpush1.msra.mxu0 0.0
    %869 = vmatprep.subr.mxu0 0.0
    %870 = vmatpush1.msra.mxu0 0.0
    %871 = vmatprep.subr.mxu0 0.0
    %872 = vmatpush1.msra.mxu0 0.0
    %873 = vmatprep.subr.mxu0 0.0
    %874 = vmatpush1.msra.mxu0 0.0
    %875 = vmatprep.subr.mxu0 0.0
    %876 = vmatpush1.msra.mxu0 0.0
    %877 = vmatprep.subr.mxu0 0.0
    %878 = vmatpush1.msra.mxu0 0.0
    %879 = vmatprep.subr.mxu0 0.0
    %880 = vmatpush1.msra.mxu0 0.0
    %881 = vmatprep.subr.mxu0 0.0
    %882 = vmatpush1.msra.mxu0 0.0
    %883 = vmatprep.subr.mxu0 0.0
    %884 = vmatpush1.msra.mxu0 0.0
    %885 = vmatprep.subr.mxu0 0.0
    %886 = vmatpush1.msra.mxu0 0.0
    %887 = vmatprep.subr.mxu0 0.0
    %888 = vmatpush1.msra.mxu0 0.0
    %889 = vmatprep.subr.mxu0 0.0
    %890 = vmatpush1.msra.mxu0 0.0
    %891 = vmatprep.subr.mxu0 0.0
    %892 = vmatpush1.msra.mxu0 0.0
    %893 = vmatprep.subr.mxu0 0.0
    %894 = vmatpush1.msra.mxu0 0.0
    %895 = vmatprep.mubr.f32.mxu0 0.0
    %896 = vmatmul.mubr.f32.gmra.mrb[0].mxu0 %v830
    %v897 = vpop.f32.mrb[0].mxu0
    %v898 = vadd.f32 0.0, %v897
    %v899 = vpop.f32.mrb[0].mxu0
    %v900 = vadd.f32 0.0, %v899
    %901 = vdwg.mxu0
    %902 = vmatprep.subr.mxu0 0.0
    %903 = vmatpush1.msra.mxu0 %v134
    %904 = vmatprep.subr.mxu0 0.0
    %905 = vmatpush1.msra.mxu0 %v137
    %906 = vmatprep.subr.mxu0 0.0
    %907 = vmatpush1.msra.mxu0 %v140
    %908 = vmatprep.subr.mxu0 0.0
    %909 = vmatpush1.msra.mxu0 %v143
    %910 = vmatprep.subr.mxu0 0.0
    %911 = vmatpush1.msra.mxu0 %v146
    %912 = vmatprep.subr.mxu0 0.0
    %913 = vmatpush1.msra.mxu0 %v149
    %914 = vmatprep.subr.mxu0 0.0
    %915 = vmatpush1.msra.mxu0 %v152
    %916 = vmatprep.subr.mxu0 0.0
    %917 = vmatpush1.msra.mxu0 %v155
    %918 = vmatprep.subr.mxu0 0.0
    %919 = vmatpush1.msra.mxu0 %v158
    %920 = vmatprep.subr.mxu0 0.0
    %921 = vmatpush1.msra.mxu0 %v161
    %922 = vmatprep.subr.mxu0 0.0
    %923 = vmatpush1.msra.mxu0 %v164
    %924 = vmatprep.subr.mxu0 0.0
    %925 = vmatpush1.msra.mxu0 %v167
    %926 = vmatprep.subr.mxu0 0.0
    %927 = vmatpush1.msra.mxu0 %v170
    %928 = vmatprep.subr.mxu0 0.0
    %929 = vmatpush1.msra.mxu0 %v173
    %930 = vmatprep.subr.mxu0 0.0
    %931 = vmatpush1.msra.mxu0 %v176
    %932 = vmatprep.subr.mxu0 0.0
    %933 = vmatpush1.msra.mxu0 %v179
    %934 = vmatprep.subr.mxu0 0.0
    %935 = vmatpush1.msra.mxu0 0.0
    %936 = vmatprep.subr.mxu0 0.0
    %937 = vmatpush1.msra.mxu0 0.0
    %938 = vmatprep.subr.mxu0 0.0
    %939 = vmatpush1.msra.mxu0 0.0
    %940 = vmatprep.subr.mxu0 0.0
    %941 = vmatpush1.msra.mxu0 0.0
    %942 = vmatprep.subr.mxu0 0.0
    %943 = vmatpush1.msra.mxu0 0.0
    %944 = vmatprep.subr.mxu0 0.0
    %945 = vmatpush1.msra.mxu0 0.0
    %946 = vmatprep.subr.mxu0 0.0
    %947 = vmatpush1.msra.mxu0 0.0
    %948 = vmatprep.subr.mxu0 0.0
    %949 = vmatpush1.msra.mxu0 0.0
    %950 = vmatprep.subr.mxu0 0.0
    %951 = vmatpush1.msra.mxu0 0.0
    %952 = vmatprep.subr.mxu0 0.0
    %953 = vmatpush1.msra.mxu0 0.0
    %954 = vmatprep.subr.mxu0 0.0
    %955 = vmatpush1.msra.mxu0 0.0
    %956 = vmatprep.subr.mxu0 0.0
    %957 = vmatpush1.msra.mxu0 0.0
    %958 = vmatprep.subr.mxu0 0.0
    %959 = vmatpush1.msra.mxu0 0.0
    %960 = vmatprep.subr.mxu0 0.0
    %961 = vmatpush1.msra.mxu0 0.0
    %962 = vmatprep.subr.mxu0 0.0
    %963 = vmatpush1.msra.mxu0 0.0
    %964 = vmatprep.subr.mxu0 0.0
    %965 = vmatpush1.msra.mxu0 0.0
    %966 = vmatprep.mubr.f32.mxu0 0.0
    %967 = vmatmul.mubr.f32.gmra.mrb[0].mxu0 %v830
    %v968 = vpop.f32.mrb[0].mxu0
    %v969 = vadd.f32 0.0, %v968
    %v970 = vpop.f32.mrb[0].mxu0
    %971 = vdwg.mxu0
    %s972 = sld [smem:[#allocation3 + $0x4]]
    %s973 = sshra.s32 %s972, 3
    %s974 = sand.u32 %s972, 7
    %s975 = sshra.s32 %s972, 3
    %s976 = sand.u32 %s972, 7
    %s977 = smul.u32 %s973, 3
    %s978 = smul.u32 %s977, 8
    %s979 = sadd.s32 %s978, %s976
    %s980 = scalar_lea.vmem [#allocation4], %s979
    %v981 = vld [vmem:[%s980] ss:$8 sm:$0x7]
    %s982 = sld [smem:[#allocation3 + $0x84]]
    %s983 = sshra.s32 %s982, 3
    %s984 = sand.u32 %s982, 7
    %s985 = sshra.s32 %s982, 3
    %s986 = sand.u32 %s982, 7
    %s987 = smul.u32 %s983, 3
    %s988 = smul.u32 %s987, 8
    %s989 = sadd.s32 %s988, %s986
    %s990 = scalar_lea.vmem [#allocation4], %s989
    %v991 = vld [vmem:[%s990] ss:$8 sm:$0x7]
    %v993 = vlaneseq
    %v994 = vshrl.u32 %v993, 7
    %v995 = vsub.s32 0, %v994
    %v996 = vrot.slane %v981, %v995
    %v997 = vlaneseq
    %v998 = vshrl.u32 %v997, 7
    %v999 = vsub.s32 1, %v998
    %v1000 = vrot.slane %v981, %v999
    %v1001 = vlaneseq
    %v1002 = vshrl.u32 %v1001, 7
    %v1003 = vsub.s32 2, %v1002
    %v1004 = vrot.slane %v981, %v1003
    %v1009 = vlaneseq
    %v1010 = vshrl.u32 %v1009, 7
    %v1011 = vsub.s32 0, %v1010
    %v1012 = vrot.slane %v991, %v1011
    %v1013 = vlaneseq
    %v1014 = vshrl.u32 %v1013, 7
    %v1015 = vsub.s32 1, %v1014
    %v1016 = vrot.slane %v991, %v1015
    %v1017 = vlaneseq
    %v1018 = vshrl.u32 %v1017, 7
    %v1019 = vsub.s32 2, %v1018
    %v1020 = vrot.slane %v991, %v1019
    %v1024 = vsel %vm107, %v996, %v1012
    %v1025 = vsel %vm107, %v1000, %v1016
    %v1026 = vsel %vm107, %v1004, %v1020
    %v1027 = vadd.f32 %v1024, %v898
    %v1028 = vadd.f32 %v1025, %v900
    %v1029 = vxor.u32 %v1027, 2147483648
    %v1030 = vxor.u32 %v1028, 2147483648
    %v1031 = vmul.f32 %v1029, 1.442695
    %v1032 = vpow.pop %v1031
    %v1033 = vmul.f32 %v1030, 1.442695
    %v1034 = vpow.pop %v1033
    %v1035 = vadd.f32 %v1032, 1.0
    %v1036 = vadd.f32 %v1034, 1.0
    %v1037 = vrcp.pop %v1035
    %v1038 = vmul.f32 1.0, %v1037
    %v1039 = vrcp.pop %v1036
    %v1040 = vmul.f32 1.0, %v1039
    %v1041 = vadd.f32 %v969, %v53
    %v1042 = vmul.f32 %v1038, %v1041
    %v1043 = vadd.f32 %v1026, %v1042
    %v1044 = vtanh.pop %v1043
    %v1045 = vsub.f32 %v830, %v1044
    %v1046 = vmul.f32 %v1040, %v1045
    %v1047 = vadd.f32 %v1044, %v1046
    %1048 = vmatprep.subr.mxu0 %v133
    %1049 = vmatpush1.msra.mxu0 %v132
    %1050 = vmatprep.subr.mxu0 %v136
    %1051 = vmatpush1.msra.mxu0 %v135
    %1052 = vmatprep.subr.mxu0 %v139
    %1053 = vmatpush1.msra.mxu0 %v138
    %1054 = vmatprep.subr.mxu0 %v142
    %1055 = vmatpush1.msra.mxu0 %v141
    %1056 = vmatprep.subr.mxu0 %v145
    %1057 = vmatpush1.msra.mxu0 %v144
    %1058 = vmatprep.subr.mxu0 %v148
    %1059 = vmatpush1.msra.mxu0 %v147
    %1060 = vmatprep.subr.mxu0 %v151
    %1061 = vmatpush1.msra.mxu0 %v150
    %1062 = vmatprep.subr.mxu0 %v154
    %1063 = vmatpush1.msra.mxu0 %v153
    %1064 = vmatprep.subr.mxu0 %v157
    %1065 = vmatpush1.msra.mxu0 %v156
    %1066 = vmatprep.subr.mxu0 %v160
    %1067 = vmatpush1.msra.mxu0 %v159
    %1068 = vmatprep.subr.mxu0 %v163
    %1069 = vmatpush1.msra.mxu0 %v162
    %1070 = vmatprep.subr.mxu0 %v166
    %1071 = vmatpush1.msra.mxu0 %v165
    %1072 = vmatprep.subr.mxu0 %v169
    %1073 = vmatpush1.msra.mxu0 %v168
    %1074 = vmatprep.subr.mxu0 %v172
    %1075 = vmatpush1.msra.mxu0 %v171
    %1076 = vmatprep.subr.mxu0 %v175
    %1077 = vmatpush1.msra.mxu0 %v174
    %1078 = vmatprep.subr.mxu0 %v178
    %1079 = vmatpush1.msra.mxu0 %v177
    %1080 = vmatprep.subr.mxu0 0.0
    %1081 = vmatpush1.msra.mxu0 0.0
    %1082 = vmatprep.subr.mxu0 0.0
    %1083 = vmatpush1.msra.mxu0 0.0
    %1084 = vmatprep.subr.mxu0 0.0
    %1085 = vmatpush1.msra.mxu0 0.0
    %1086 = vmatprep.subr.mxu0 0.0
    %1087 = vmatpush1.msra.mxu0 0.0
    %1088 = vmatprep.subr.mxu0 0.0
    %1089 = vmatpush1.msra.mxu0 0.0
    %1090 = vmatprep.subr.mxu0 0.0
    %1091 = vmatpush1.msra.mxu0 0.0
    %1092 = vmatprep.subr.mxu0 0.0
    %1093 = vmatpush1.msra.mxu0 0.0
    %1094 = vmatprep.subr.mxu0 0.0
    %1095 = vmatpush1.msra.mxu0 0.0
    %1096 = vmatprep.subr.mxu0 0.0
    %1097 = vmatpush1.msra.mxu0 0.0
    %1098 = vmatprep.subr.mxu0 0.0
    %1099 = vmatpush1.msra.mxu0 0.0
    %1100 = vmatprep.subr.mxu0 0.0
    %1101 = vmatpush1.msra.mxu0 0.0
    %1102 = vmatprep.subr.mxu0 0.0
    %1103 = vmatpush1.msra.mxu0 0.0
    %1104 = vmatprep.subr.mxu0 0.0
    %1105 = vmatpush1.msra.mxu0 0.0
    %1106 = vmatprep.subr.mxu0 0.0
    %1107 = vmatpush1.msra.mxu0 0.0
    %1108 = vmatprep.subr.mxu0 0.0
    %1109 = vmatpush1.msra.mxu0 0.0
    %1110 = vmatprep.subr.mxu0 0.0
    %1111 = vmatpush1.msra.mxu0 0.0
    %1112 = vmatprep.mubr.f32.mxu0 0.0
    %1113 = vmatmul.mubr.f32.gmra.mrb[0].mxu0 %v1047
    %v1114 = vpop.f32.mrb[0].mxu0
    %v1115 = vadd.f32 0.0, %v1114
    %v1116 = vpop.f32.mrb[0].mxu0
    %v1117 = vadd.f32 0.0, %v1116
    %1118 = vdwg.mxu0
    %1119 = vmatprep.subr.mxu0 0.0
    %1120 = vmatpush1.msra.mxu0 %v134
    %1121 = vmatprep.subr.mxu0 0.0
    %1122 = vmatpush1.msra.mxu0 %v137
    %1123 = vmatprep.subr.mxu0 0.0
    %1124 = vmatpush1.msra.mxu0 %v140
    %1125 = vmatprep.subr.mxu0 0.0
    %1126 = vmatpush1.msra.mxu0 %v143
    %1127 = vmatprep.subr.mxu0 0.0
    %1128 = vmatpush1.msra.mxu0 %v146
    %1129 = vmatprep.subr.mxu0 0.0
    %1130 = vmatpush1.msra.mxu0 %v149
    %1131 = vmatprep.subr.mxu0 0.0
    %1132 = vmatpush1.msra.mxu0 %v152
    %1133 = vmatprep.subr.mxu0 0.0
    %1134 = vmatpush1.msra.mxu0 %v155
    %1135 = vmatprep.subr.mxu0 0.0
    %1136 = vmatpush1.msra.mxu0 %v158
    %1137 = vmatprep.subr.mxu0 0.0
    %1138 = vmatpush1.msra.mxu0 %v161
    %1139 = vmatprep.subr.mxu0 0.0
    %1140 = vmatpush1.msra.mxu0 %v164
    %1141 = vmatprep.subr.mxu0 0.0
    %1142 = vmatpush1.msra.mxu0 %v167
    %1143 = vmatprep.subr.mxu0 0.0
    %1144 = vmatpush1.msra.mxu0 %v170
    %1145 = vmatprep.subr.mxu0 0.0
    %1146 = vmatpush1.msra.mxu0 %v173
    %1147 = vmatprep.subr.mxu0 0.0
    %1148 = vmatpush1.msra.mxu0 %v176
    %1149 = vmatprep.subr.mxu0 0.0
    %1150 = vmatpush1.msra.mxu0 %v179
    %1151 = vmatprep.subr.mxu0 0.0
    %1152 = vmatpush1.msra.mxu0 0.0
    %1153 = vmatprep.subr.mxu0 0.0
    %1154 = vmatpush1.msra.mxu0 0.0
    %1155 = vmatprep.subr.mxu0 0.0
    %1156 = vmatpush1.msra.mxu0 0.0
    %1157 = vmatprep.subr.mxu0 0.0
    %1158 = vmatpush1.msra.mxu0 0.0
    %1159 = vmatprep.subr.mxu0 0.0
    %1160 = vmatpush1.msra.mxu0 0.0
    %1161 = vmatprep.subr.mxu0 0.0
    %1162 = vmatpush1.msra.mxu0 0.0
    %1163 = vmatprep.subr.mxu0 0.0
    %1164 = vmatpush1.msra.mxu0 0.0
    %1165 = vmatprep.subr.mxu0 0.0
    %1166 = vmatpush1.msra.mxu0 0.0
    %1167 = vmatprep.subr.mxu0 0.0
    %1168 = vmatpush1.msra.mxu0 0.0
    %1169 = vmatprep.subr.mxu0 0.0
    %1170 = vmatpush1.msra.mxu0 0.0
    %1171 = vmatprep.subr.mxu0 0.0
    %1172 = vmatpush1.msra.mxu0 0.0
    %1173 = vmatprep.subr.mxu0 0.0
    %1174 = vmatpush1.msra.mxu0 0.0
    %1175 = vmatprep.subr.mxu0 0.0
    %1176 = vmatpush1.msra.mxu0 0.0
    %1177 = vmatprep.subr.mxu0 0.0
    %1178 = vmatpush1.msra.mxu0 0.0
    %1179 = vmatprep.subr.mxu0 0.0
    %1180 = vmatpush1.msra.mxu0 0.0
    %1181 = vmatprep.subr.mxu0 0.0
    %1182 = vmatpush1.msra.mxu0 0.0
    %1183 = vmatprep.mubr.f32.mxu0 0.0
    %1184 = vmatmul.mubr.f32.gmra.mrb[0].mxu0 %v1047
    %v1185 = vpop.f32.mrb[0].mxu0
    %v1186 = vadd.f32 0.0, %v1185
    %v1187 = vpop.f32.mrb[0].mxu0
    %1188 = vdwg.mxu0
    %s1189 = sld [smem:[#allocation3 + $0x5]]
    %s1190 = sshra.s32 %s1189, 3
    %s1191 = sand.u32 %s1189, 7
    %s1192 = sshra.s32 %s1189, 3
    %s1193 = sand.u32 %s1189, 7
    %s1194 = smul.u32 %s1190, 3
    %s1195 = smul.u32 %s1194, 8
    %s1196 = sadd.s32 %s1195, %s1193
    %s1197 = scalar_lea.vmem [#allocation4], %s1196
    %v1198 = vld [vmem:[%s1197] ss:$8 sm:$0x7]
    %s1199 = sld [smem:[#allocation3 + $0x85]]
    %s1200 = sshra.s32 %s1199, 3
    %s1201 = sand.u32 %s1199, 7
    %s1202 = sshra.s32 %s1199, 3
    %s1203 = sand.u32 %s1199, 7
    %s1204 = smul.u32 %s1200, 3
    %s1205 = smul.u32 %s1204, 8
    %s1206 = sadd.s32 %s1205, %s1203
    %s1207 = scalar_lea.vmem [#allocation4], %s1206
    %v1208 = vld [vmem:[%s1207] ss:$8 sm:$0x7]
    %v1210 = vlaneseq
    %v1211 = vshrl.u32 %v1210, 7
    %v1212 = vsub.s32 0, %v1211
    %v1213 = vrot.slane %v1198, %v1212
    %v1214 = vlaneseq
    %v1215 = vshrl.u32 %v1214, 7
    %v1216 = vsub.s32 1, %v1215
    %v1217 = vrot.slane %v1198, %v1216
    %v1218 = vlaneseq
    %v1219 = vshrl.u32 %v1218, 7
    %v1220 = vsub.s32 2, %v1219
    %v1221 = vrot.slane %v1198, %v1220
    %v1226 = vlaneseq
    %v1227 = vshrl.u32 %v1226, 7
    %v1228 = vsub.s32 0, %v1227
    %v1229 = vrot.slane %v1208, %v1228
    %v1230 = vlaneseq
    %v1231 = vshrl.u32 %v1230, 7
    %v1232 = vsub.s32 1, %v1231
    %v1233 = vrot.slane %v1208, %v1232
    %v1234 = vlaneseq
    %v1235 = vshrl.u32 %v1234, 7
    %v1236 = vsub.s32 2, %v1235
    %v1237 = vrot.slane %v1208, %v1236
    %v1241 = vsel %vm107, %v1213, %v1229
    %v1242 = vsel %vm107, %v1217, %v1233
    %v1243 = vsel %vm107, %v1221, %v1237
    %v1244 = vadd.f32 %v1241, %v1115
    %v1245 = vadd.f32 %v1242, %v1117
    %v1246 = vxor.u32 %v1244, 2147483648
    %v1247 = vxor.u32 %v1245, 2147483648
    %v1248 = vmul.f32 %v1246, 1.442695
    %v1249 = vpow.pop %v1248
    %v1250 = vmul.f32 %v1247, 1.442695
    %v1251 = vpow.pop %v1250
    %v1252 = vadd.f32 %v1249, 1.0
    %v1253 = vadd.f32 %v1251, 1.0
    %v1254 = vrcp.pop %v1252
    %v1255 = vmul.f32 1.0, %v1254
    %v1256 = vrcp.pop %v1253
    %v1257 = vmul.f32 1.0, %v1256
    %v1258 = vadd.f32 %v1186, %v53
    %v1259 = vmul.f32 %v1255, %v1258
    %v1260 = vadd.f32 %v1243, %v1259
    %v1261 = vtanh.pop %v1260
    %v1262 = vsub.f32 %v1047, %v1261
    %v1263 = vmul.f32 %v1257, %v1262
    %v1264 = vadd.f32 %v1261, %v1263
    %1265 = vmatprep.subr.mxu0 %v133
    %1266 = vmatpush1.msra.mxu0 %v132
    %1267 = vmatprep.subr.mxu0 %v136
    %1268 = vmatpush1.msra.mxu0 %v135
    %1269 = vmatprep.subr.mxu0 %v139
    %1270 = vmatpush1.msra.mxu0 %v138
    %1271 = vmatprep.subr.mxu0 %v142
    %1272 = vmatpush1.msra.mxu0 %v141
    %1273 = vmatprep.subr.mxu0 %v145
    %1274 = vmatpush1.msra.mxu0 %v144
    %1275 = vmatprep.subr.mxu0 %v148
    %1276 = vmatpush1.msra.mxu0 %v147
    %1277 = vmatprep.subr.mxu0 %v151
    %1278 = vmatpush1.msra.mxu0 %v150
    %1279 = vmatprep.subr.mxu0 %v154
    %1280 = vmatpush1.msra.mxu0 %v153
    %1281 = vmatprep.subr.mxu0 %v157
    %1282 = vmatpush1.msra.mxu0 %v156
    %1283 = vmatprep.subr.mxu0 %v160
    %1284 = vmatpush1.msra.mxu0 %v159
    %1285 = vmatprep.subr.mxu0 %v163
    %1286 = vmatpush1.msra.mxu0 %v162
    %1287 = vmatprep.subr.mxu0 %v166
    %1288 = vmatpush1.msra.mxu0 %v165
    %1289 = vmatprep.subr.mxu0 %v169
    %1290 = vmatpush1.msra.mxu0 %v168
    %1291 = vmatprep.subr.mxu0 %v172
    %1292 = vmatpush1.msra.mxu0 %v171
    %1293 = vmatprep.subr.mxu0 %v175
    %1294 = vmatpush1.msra.mxu0 %v174
    %1295 = vmatprep.subr.mxu0 %v178
    %1296 = vmatpush1.msra.mxu0 %v177
    %1297 = vmatprep.subr.mxu0 0.0
    %1298 = vmatpush1.msra.mxu0 0.0
    %1299 = vmatprep.subr.mxu0 0.0
    %1300 = vmatpush1.msra.mxu0 0.0
    %1301 = vmatprep.subr.mxu0 0.0
    %1302 = vmatpush1.msra.mxu0 0.0
    %1303 = vmatprep.subr.mxu0 0.0
    %1304 = vmatpush1.msra.mxu0 0.0
    %1305 = vmatprep.subr.mxu0 0.0
    %1306 = vmatpush1.msra.mxu0 0.0
    %1307 = vmatprep.subr.mxu0 0.0
    %1308 = vmatpush1.msra.mxu0 0.0
    %1309 = vmatprep.subr.mxu0 0.0
    %1310 = vmatpush1.msra.mxu0 0.0
    %1311 = vmatprep.subr.mxu0 0.0
    %1312 = vmatpush1.msra.mxu0 0.0
    %1313 = vmatprep.subr.mxu0 0.0
    %1314 = vmatpush1.msra.mxu0 0.0
    %1315 = vmatprep.subr.mxu0 0.0
    %1316 = vmatpush1.msra.mxu0 0.0
    %1317 = vmatprep.subr.mxu0 0.0
    %1318 = vmatpush1.msra.mxu0 0.0
    %1319 = vmatprep.subr.mxu0 0.0
    %1320 = vmatpush1.msra.mxu0 0.0
    %1321 = vmatprep.subr.mxu0 0.0
    %1322 = vmatpush1.msra.mxu0 0.0
    %1323 = vmatprep.subr.mxu0 0.0
    %1324 = vmatpush1.msra.mxu0 0.0
    %1325 = vmatprep.subr.mxu0 0.0
    %1326 = vmatpush1.msra.mxu0 0.0
    %1327 = vmatprep.subr.mxu0 0.0
    %1328 = vmatpush1.msra.mxu0 0.0
    %1329 = vmatprep.mubr.f32.mxu0 0.0
    %1330 = vmatmul.mubr.f32.gmra.mrb[0].mxu0 %v1264
    %v1331 = vpop.f32.mrb[0].mxu0
    %v1332 = vadd.f32 0.0, %v1331
    %v1333 = vpop.f32.mrb[0].mxu0
    %v1334 = vadd.f32 0.0, %v1333
    %1335 = vdwg.mxu0
    %1336 = vmatprep.subr.mxu0 0.0
    %1337 = vmatpush1.msra.mxu0 %v134
    %1338 = vmatprep.subr.mxu0 0.0
    %1339 = vmatpush1.msra.mxu0 %v137
    %1340 = vmatprep.subr.mxu0 0.0
    %1341 = vmatpush1.msra.mxu0 %v140
    %1342 = vmatprep.subr.mxu0 0.0
    %1343 = vmatpush1.msra.mxu0 %v143
    %1344 = vmatprep.subr.mxu0 0.0
    %1345 = vmatpush1.msra.mxu0 %v146
    %1346 = vmatprep.subr.mxu0 0.0
    %1347 = vmatpush1.msra.mxu0 %v149
    %1348 = vmatprep.subr.mxu0 0.0
    %1349 = vmatpush1.msra.mxu0 %v152
    %1350 = vmatprep.subr.mxu0 0.0
    %1351 = vmatpush1.msra.mxu0 %v155
    %1352 = vmatprep.subr.mxu0 0.0
    %1353 = vmatpush1.msra.mxu0 %v158
    %1354 = vmatprep.subr.mxu0 0.0
    %1355 = vmatpush1.msra.mxu0 %v161
    %1356 = vmatprep.subr.mxu0 0.0
    %1357 = vmatpush1.msra.mxu0 %v164
    %1358 = vmatprep.subr.mxu0 0.0
    %1359 = vmatpush1.msra.mxu0 %v167
    %1360 = vmatprep.subr.mxu0 0.0
    %1361 = vmatpush1.msra.mxu0 %v170
    %1362 = vmatprep.subr.mxu0 0.0
    %1363 = vmatpush1.msra.mxu0 %v173
    %1364 = vmatprep.subr.mxu0 0.0
    %1365 = vmatpush1.msra.mxu0 %v176
    %1366 = vmatprep.subr.mxu0 0.0
    %1367 = vmatpush1.msra.mxu0 %v179
    %1368 = vmatprep.subr.mxu0 0.0
    %1369 = vmatpush1.msra.mxu0 0.0
    %1370 = vmatprep.subr.mxu0 0.0
    %1371 = vmatpush1.msra.mxu0 0.0
    %1372 = vmatprep.subr.mxu0 0.0
    %1373 = vmatpush1.msra.mxu0 0.0
    %1374 = vmatprep.subr.mxu0 0.0
    %1375 = vmatpush1.msra.mxu0 0.0
    %1376 = vmatprep.subr.mxu0 0.0
    %1377 = vmatpush1.msra.mxu0 0.0
    %1378 = vmatprep.subr.mxu0 0.0
    %1379 = vmatpush1.msra.mxu0 0.0
    %1380 = vmatprep.subr.mxu0 0.0
    %1381 = vmatpush1.msra.mxu0 0.0
    %1382 = vmatprep.subr.mxu0 0.0
    %1383 = vmatpush1.msra.mxu0 0.0
    %1384 = vmatprep.subr.mxu0 0.0
    %1385 = vmatpush1.msra.mxu0 0.0
    %1386 = vmatprep.subr.mxu0 0.0
    %1387 = vmatpush1.msra.mxu0 0.0
    %1388 = vmatprep.subr.mxu0 0.0
    %1389 = vmatpush1.msra.mxu0 0.0
    %1390 = vmatprep.subr.mxu0 0.0
    %1391 = vmatpush1.msra.mxu0 0.0
    %1392 = vmatprep.subr.mxu0 0.0
    %1393 = vmatpush1.msra.mxu0 0.0
    %1394 = vmatprep.subr.mxu0 0.0
    %1395 = vmatpush1.msra.mxu0 0.0
    %1396 = vmatprep.subr.mxu0 0.0
    %1397 = vmatpush1.msra.mxu0 0.0
    %1398 = vmatprep.subr.mxu0 0.0
    %1399 = vmatpush1.msra.mxu0 0.0
    %1400 = vmatprep.mubr.f32.mxu0 0.0
    %1401 = vmatmul.mubr.f32.gmra.mrb[0].mxu0 %v1264
    %v1402 = vpop.f32.mrb[0].mxu0
    %v1403 = vadd.f32 0.0, %v1402
    %v1404 = vpop.f32.mrb[0].mxu0
    %1405 = vdwg.mxu0
    %s1406 = sld [smem:[#allocation3 + $0x6]]
    %s1407 = sshra.s32 %s1406, 3
    %s1408 = sand.u32 %s1406, 7
    %s1409 = sshra.s32 %s1406, 3
    %s1410 = sand.u32 %s1406, 7
    %s1411 = smul.u32 %s1407, 3
    %s1412 = smul.u32 %s1411, 8
    %s1413 = sadd.s32 %s1412, %s1410
    %s1414 = scalar_lea.vmem [#allocation4], %s1413
    %v1415 = vld [vmem:[%s1414] ss:$8 sm:$0x7]
    %s1416 = sld [smem:[#allocation3 + $0x86]]
    %s1417 = sshra.s32 %s1416, 3
    %s1418 = sand.u32 %s1416, 7
    %s1419 = sshra.s32 %s1416, 3
    %s1420 = sand.u32 %s1416, 7
    %s1421 = smul.u32 %s1417, 3
    %s1422 = smul.u32 %s1421, 8
    %s1423 = sadd.s32 %s1422, %s1420
    %s1424 = scalar_lea.vmem [#allocation4], %s1423
    %v1425 = vld [vmem:[%s1424] ss:$8 sm:$0x7]
    %v1427 = vlaneseq
    %v1428 = vshrl.u32 %v1427, 7
    %v1429 = vsub.s32 0, %v1428
    %v1430 = vrot.slane %v1415, %v1429
    %v1431 = vlaneseq
    %v1432 = vshrl.u32 %v1431, 7
    %v1433 = vsub.s32 1, %v1432
    %v1434 = vrot.slane %v1415, %v1433
    %v1435 = vlaneseq
    %v1436 = vshrl.u32 %v1435, 7
    %v1437 = vsub.s32 2, %v1436
    %v1438 = vrot.slane %v1415, %v1437
    %v1443 = vlaneseq
    %v1444 = vshrl.u32 %v1443, 7
    %v1445 = vsub.s32 0, %v1444
    %v1446 = vrot.slane %v1425, %v1445
    %v1447 = vlaneseq
    %v1448 = vshrl.u32 %v1447, 7
    %v1449 = vsub.s32 1, %v1448
    %v1450 = vrot.slane %v1425, %v1449
    %v1451 = vlaneseq
    %v1452 = vshrl.u32 %v1451, 7
    %v1453 = vsub.s32 2, %v1452
    %v1454 = vrot.slane %v1425, %v1453
    %v1458 = vsel %vm107, %v1430, %v1446
    %v1459 = vsel %vm107, %v1434, %v1450
    %v1460 = vsel %vm107, %v1438, %v1454
    %v1461 = vadd.f32 %v1458, %v1332
    %v1462 = vadd.f32 %v1459, %v1334
    %v1463 = vxor.u32 %v1461, 2147483648
    %v1464 = vxor.u32 %v1462, 2147483648
    %v1465 = vmul.f32 %v1463, 1.442695
    %v1466 = vpow.pop %v1465
    %v1467 = vmul.f32 %v1464, 1.442695
    %v1468 = vpow.pop %v1467
    %v1469 = vadd.f32 %v1466, 1.0
    %v1470 = vadd.f32 %v1468, 1.0
    %v1471 = vrcp.pop %v1469
    %v1472 = vmul.f32 1.0, %v1471
    %v1473 = vrcp.pop %v1470
    %v1474 = vmul.f32 1.0, %v1473
    %v1475 = vadd.f32 %v1403, %v53
    %v1476 = vmul.f32 %v1472, %v1475
    %v1477 = vadd.f32 %v1460, %v1476
    %v1478 = vtanh.pop %v1477
    %v1479 = vsub.f32 %v1264, %v1478
    %v1480 = vmul.f32 %v1474, %v1479
    %v1481 = vadd.f32 %v1478, %v1480
    %1482 = vmatprep.subr.mxu0 %v133
    %1483 = vmatpush1.msra.mxu0 %v132
    %1484 = vmatprep.subr.mxu0 %v136
    %1485 = vmatpush1.msra.mxu0 %v135
    %1486 = vmatprep.subr.mxu0 %v139
    %1487 = vmatpush1.msra.mxu0 %v138
    %1488 = vmatprep.subr.mxu0 %v142
    %1489 = vmatpush1.msra.mxu0 %v141
    %1490 = vmatprep.subr.mxu0 %v145
    %1491 = vmatpush1.msra.mxu0 %v144
    %1492 = vmatprep.subr.mxu0 %v148
    %1493 = vmatpush1.msra.mxu0 %v147
    %1494 = vmatprep.subr.mxu0 %v151
    %1495 = vmatpush1.msra.mxu0 %v150
    %1496 = vmatprep.subr.mxu0 %v154
    %1497 = vmatpush1.msra.mxu0 %v153
    %1498 = vmatprep.subr.mxu0 %v157
    %1499 = vmatpush1.msra.mxu0 %v156
    %1500 = vmatprep.subr.mxu0 %v160
    %1501 = vmatpush1.msra.mxu0 %v159
    %1502 = vmatprep.subr.mxu0 %v163
    %1503 = vmatpush1.msra.mxu0 %v162
    %1504 = vmatprep.subr.mxu0 %v166
    %1505 = vmatpush1.msra.mxu0 %v165
    %1506 = vmatprep.subr.mxu0 %v169
    %1507 = vmatpush1.msra.mxu0 %v168
    %1508 = vmatprep.subr.mxu0 %v172
    %1509 = vmatpush1.msra.mxu0 %v171
    %1510 = vmatprep.subr.mxu0 %v175
    %1511 = vmatpush1.msra.mxu0 %v174
    %1512 = vmatprep.subr.mxu0 %v178
    %1513 = vmatpush1.msra.mxu0 %v177
    %1514 = vmatprep.subr.mxu0 0.0
    %1515 = vmatpush1.msra.mxu0 0.0
    %1516 = vmatprep.subr.mxu0 0.0
    %1517 = vmatpush1.msra.mxu0 0.0
    %1518 = vmatprep.subr.mxu0 0.0
    %1519 = vmatpush1.msra.mxu0 0.0
    %1520 = vmatprep.subr.mxu0 0.0
    %1521 = vmatpush1.msra.mxu0 0.0
    %1522 = vmatprep.subr.mxu0 0.0
    %1523 = vmatpush1.msra.mxu0 0.0
    %1524 = vmatprep.subr.mxu0 0.0
    %1525 = vmatpush1.msra.mxu0 0.0
    %1526 = vmatprep.subr.mxu0 0.0
    %1527 = vmatpush1.msra.mxu0 0.0
    %1528 = vmatprep.subr.mxu0 0.0
    %1529 = vmatpush1.msra.mxu0 0.0
    %1530 = vmatprep.subr.mxu0 0.0
    %1531 = vmatpush1.msra.mxu0 0.0
    %1532 = vmatprep.subr.mxu0 0.0
    %1533 = vmatpush1.msra.mxu0 0.0
    %1534 = vmatprep.subr.mxu0 0.0
    %1535 = vmatpush1.msra.mxu0 0.0
    %1536 = vmatprep.subr.mxu0 0.0
    %1537 = vmatpush1.msra.mxu0 0.0
    %1538 = vmatprep.subr.mxu0 0.0
    %1539 = vmatpush1.msra.mxu0 0.0
    %1540 = vmatprep.subr.mxu0 0.0
    %1541 = vmatpush1.msra.mxu0 0.0
    %1542 = vmatprep.subr.mxu0 0.0
    %1543 = vmatpush1.msra.mxu0 0.0
    %1544 = vmatprep.subr.mxu0 0.0
    %1545 = vmatpush1.msra.mxu0 0.0
    %1546 = vmatprep.mubr.f32.mxu0 0.0
    %1547 = vmatmul.mubr.f32.gmra.mrb[0].mxu0 %v1481
    %v1548 = vpop.f32.mrb[0].mxu0
    %v1549 = vadd.f32 0.0, %v1548
    %v1550 = vpop.f32.mrb[0].mxu0
    %v1551 = vadd.f32 0.0, %v1550
    %1552 = vdwg.mxu0
    %1553 = vmatprep.subr.mxu0 0.0
    %1554 = vmatpush1.msra.mxu0 %v134
    %1555 = vmatprep.subr.mxu0 0.0
    %1556 = vmatpush1.msra.mxu0 %v137
    %1557 = vmatprep.subr.mxu0 0.0
    %1558 = vmatpush1.msra.mxu0 %v140
    %1559 = vmatprep.subr.mxu0 0.0
    %1560 = vmatpush1.msra.mxu0 %v143
    %1561 = vmatprep.subr.mxu0 0.0
    %1562 = vmatpush1.msra.mxu0 %v146
    %1563 = vmatprep.subr.mxu0 0.0
    %1564 = vmatpush1.msra.mxu0 %v149
    %1565 = vmatprep.subr.mxu0 0.0
    %1566 = vmatpush1.msra.mxu0 %v152
    %1567 = vmatprep.subr.mxu0 0.0
    %1568 = vmatpush1.msra.mxu0 %v155
    %1569 = vmatprep.subr.mxu0 0.0
    %1570 = vmatpush1.msra.mxu0 %v158
    %1571 = vmatprep.subr.mxu0 0.0
    %1572 = vmatpush1.msra.mxu0 %v161
    %1573 = vmatprep.subr.mxu0 0.0
    %1574 = vmatpush1.msra.mxu0 %v164
    %1575 = vmatprep.subr.mxu0 0.0
    %1576 = vmatpush1.msra.mxu0 %v167
    %1577 = vmatprep.subr.mxu0 0.0
    %1578 = vmatpush1.msra.mxu0 %v170
    %1579 = vmatprep.subr.mxu0 0.0
    %1580 = vmatpush1.msra.mxu0 %v173
    %1581 = vmatprep.subr.mxu0 0.0
    %1582 = vmatpush1.msra.mxu0 %v176
    %1583 = vmatprep.subr.mxu0 0.0
    %1584 = vmatpush1.msra.mxu0 %v179
    %1585 = vmatprep.subr.mxu0 0.0
    %1586 = vmatpush1.msra.mxu0 0.0
    %1587 = vmatprep.subr.mxu0 0.0
    %1588 = vmatpush1.msra.mxu0 0.0
    %1589 = vmatprep.subr.mxu0 0.0
    %1590 = vmatpush1.msra.mxu0 0.0
    %1591 = vmatprep.subr.mxu0 0.0
    %1592 = vmatpush1.msra.mxu0 0.0
    %1593 = vmatprep.subr.mxu0 0.0
    %1594 = vmatpush1.msra.mxu0 0.0
    %1595 = vmatprep.subr.mxu0 0.0
    %1596 = vmatpush1.msra.mxu0 0.0
    %1597 = vmatprep.subr.mxu0 0.0
    %1598 = vmatpush1.msra.mxu0 0.0
    %1599 = vmatprep.subr.mxu0 0.0
    %1600 = vmatpush1.msra.mxu0 0.0
    %1601 = vmatprep.subr.mxu0 0.0
    %1602 = vmatpush1.msra.mxu0 0.0
    %1603 = vmatprep.subr.mxu0 0.0
    %1604 = vmatpush1.msra.mxu0 0.0
    %1605 = vmatprep.subr.mxu0 0.0
    %1606 = vmatpush1.msra.mxu0 0.0
    %1607 = vmatprep.subr.mxu0 0.0
    %1608 = vmatpush1.msra.mxu0 0.0
    %1609 = vmatprep.subr.mxu0 0.0
    %1610 = vmatpush1.msra.mxu0 0.0
    %1611 = vmatprep.subr.mxu0 0.0
    %1612 = vmatpush1.msra.mxu0 0.0
    %1613 = vmatprep.subr.mxu0 0.0
    %1614 = vmatpush1.msra.mxu0 0.0
    %1615 = vmatprep.subr.mxu0 0.0
    %1616 = vmatpush1.msra.mxu0 0.0
    %1617 = vmatprep.mubr.f32.mxu0 0.0
    %1618 = vmatmul.mubr.f32.gmra.mrb[0].mxu0 %v1481
    %v1619 = vpop.f32.mrb[0].mxu0
    %v1620 = vadd.f32 0.0, %v1619
    %v1621 = vpop.f32.mrb[0].mxu0
    %1622 = vdwg.mxu0
    %s1623 = sld [smem:[#allocation3 + $0x7]]
    %s1624 = sshra.s32 %s1623, 3
    %s1625 = sand.u32 %s1623, 7
    %s1626 = sshra.s32 %s1623, 3
    %s1627 = sand.u32 %s1623, 7
    %s1628 = smul.u32 %s1624, 3
    %s1629 = smul.u32 %s1628, 8
    %s1630 = sadd.s32 %s1629, %s1627
    %s1631 = scalar_lea.vmem [#allocation4], %s1630
    %v1632 = vld [vmem:[%s1631] ss:$8 sm:$0x7]
    %s1633 = sld [smem:[#allocation3 + $0x87]]
    %s1634 = sshra.s32 %s1633, 3
    %s1635 = sand.u32 %s1633, 7
    %s1636 = sshra.s32 %s1633, 3
    %s1637 = sand.u32 %s1633, 7
    %s1638 = smul.u32 %s1634, 3
    %s1639 = smul.u32 %s1638, 8
    %s1640 = sadd.s32 %s1639, %s1637
    %s1641 = scalar_lea.vmem [#allocation4], %s1640
    %v1642 = vld [vmem:[%s1641] ss:$8 sm:$0x7]
    %v1644 = vlaneseq
    %v1645 = vshrl.u32 %v1644, 7
    %v1646 = vsub.s32 0, %v1645
    %v1647 = vrot.slane %v1632, %v1646
    %v1648 = vlaneseq
    %v1649 = vshrl.u32 %v1648, 7
    %v1650 = vsub.s32 1, %v1649
    %v1651 = vrot.slane %v1632, %v1650
    %v1652 = vlaneseq
    %v1653 = vshrl.u32 %v1652, 7
    %v1654 = vsub.s32 2, %v1653
    %v1655 = vrot.slane %v1632, %v1654
    %v1660 = vlaneseq
    %v1661 = vshrl.u32 %v1660, 7
    %v1662 = vsub.s32 0, %v1661
    %v1663 = vrot.slane %v1642, %v1662
    %v1664 = vlaneseq
    %v1665 = vshrl.u32 %v1664, 7
    %v1666 = vsub.s32 1, %v1665
    %v1667 = vrot.slane %v1642, %v1666
    %v1668 = vlaneseq
    %v1669 = vshrl.u32 %v1668, 7
    %v1670 = vsub.s32 2, %v1669
    %v1671 = vrot.slane %v1642, %v1670
    %v1675 = vsel %vm107, %v1647, %v1663
    %v1676 = vsel %vm107, %v1651, %v1667
    %v1677 = vsel %vm107, %v1655, %v1671
    %v1678 = vadd.f32 %v1675, %v1549
    %v1679 = vadd.f32 %v1676, %v1551
    %v1680 = vxor.u32 %v1678, 2147483648
    %v1681 = vxor.u32 %v1679, 2147483648
    %v1682 = vmul.f32 %v1680, 1.442695
    %v1683 = vpow.pop %v1682
    %v1684 = vmul.f32 %v1681, 1.442695
    %v1685 = vpow.pop %v1684
    %v1686 = vadd.f32 %v1683, 1.0
    %v1687 = vadd.f32 %v1685, 1.0
    %v1688 = vrcp.pop %v1686
    %v1689 = vmul.f32 1.0, %v1688
    %v1690 = vrcp.pop %v1687
    %v1691 = vmul.f32 1.0, %v1690
    %v1692 = vadd.f32 %v1620, %v53
    %v1693 = vmul.f32 %v1689, %v1692
    %v1694 = vadd.f32 %v1677, %v1693
    %v1695 = vtanh.pop %v1694
    %v1696 = vsub.f32 %v1481, %v1695
    %v1697 = vmul.f32 %v1691, %v1696
    %v1698 = vadd.f32 %v1695, %v1697
    %vm1699 = vcmask 254976
    %1700 = vst.msk [vmem:[#allocation9] sm:$0x3] %vm1699, %v1698
    // Predicated region
    $region22: #{tpu_custom_call.1} parent=1 // pred_check
      _
    $region23: #{tpu_custom_call.1} parent=1 // pred_check_branch
      %1702 = sbr.rel (0) target = $region25
    $region24: #{tpu_custom_call.1} parent=1 // pred_region
      %s1704 = ssub.s32 32, 32
      %1705 = vsyncadd [#allocation6], %s1704
      %s1707 = sshll.u32 [#allocation9], 4
      %s1708 = int_to_ptr.vmem [resolvable:$true] %s1707
      %1710 = dma.vmem_to_hbm [thread:$0]  %s1708, 32, %s4, [#allocation6]
    $region25: #{tpu_custom_call.1} parent=1 // pred_fallthru
      _
    // Predicated region
    $region26: #{tpu_custom_call.1} parent=1 // pred_check
      _
    $region27: #{tpu_custom_call.1} parent=1 // pred_check_branch
      %1712 = sbr.rel (0) target = $region29
    $region28: #{tpu_custom_call.1} parent=1 // pred_region
      %1713 = dma.done [#allocation6], 32
    $region29: #{tpu_custom_call.1} parent=1 // pred_fallthru
      _
    %1714 = vsyncpa [#allocation5], 1
    %1715 = vsyncpa [#allocation8], 1
    %1716 = vsyncpa [#allocation6], 1

</llo_original>
